<compile_context>
chip_gen: v7x
topology: tpu7x:2x2x1
jax: 0.10.0
libtpu: 0.0.40
codegen_flags: <defaults>
</compile_context>

<pallas_src>
import numpy as np
from functools import partial

import jax
import jax.numpy as jnp
from jax.experimental import pallas as pl
from jax.experimental.pallas import tpu as pltpu


# ----------------------------- filter design (numpy, deterministic) -----------------------------

def _kaiser_atten(numtaps, width_norm):
    return 2.285 * (numtaps - 1) * np.pi * width_norm + 7.95


def _kaiser_beta(a):
    if a > 50:
        return 0.1102 * (a - 8.7)
    if a > 21:
        return 0.5842 * (a - 21) ** 0.4 + 0.07886 * (a - 21)
    return 0.0


def design_lowpass_filter(numtaps, cutoff, width, fs):
    """Equivalent to scipy.signal.firwin(numtaps, cutoff, width=width, fs=fs)."""
    if numtaps == 1:
        return None
    nyq = fs / 2.0
    c = cutoff / nyq
    beta = _kaiser_beta(_kaiser_atten(numtaps, width / nyq))
    m = np.arange(numtaps) - 0.5 * (numtaps - 1)
    h = c * np.sinc(c * m)
    h = h * np.kaiser(numtaps, beta)
    h = h / np.sum(h)
    # TODO(synk): radial (jinc-based) filter needs scipy.special.j1; only separable filters here.
    return h.astype(np.float32)


def upfirdn1d_matrix(length_in, f, up, down, pad0, pad1, gain):
    """Dense matrix of the per-axis upfirdn linear map (zero-stuff -> pad -> FIR -> decimate).

    Matches the per-axis behaviour of the StyleGAN3 upfirdn2d reference with a separable 1-D
    filter: gain is split as sqrt(gain) per axis and the filter is flipped before correlation."""
    if f is None:
        f = np.ones(1, dtype=np.float64)
    fw = np.asarray(f, dtype=np.float64) * (float(gain) ** 0.5)
    fw = fw[::-1]
    cols = []
    for i in range(length_in):
        x = np.zeros(length_in * up, dtype=np.float64)
        x[i * up] = 1.0
        x = np.concatenate([np.zeros(max(pad0, 0)), x, np.zeros(max(pad1, 0))])
        if pad0 < 0:
            x = x[-pad0:]
        if pad1 < 0:
            x = x[: x.shape[0] + pad1]
        y = np.correlate(x, fw, mode="valid")[::down]
        cols.append(y)
    return np.stack(cols, axis=1).astype(np.float32)  # (length_out, length_in)


# ----------------------------- Pallas kernels -----------------------------

def _modconv_kernel(x_ref, w_ref, cmul_ref, omul_ref, b_ref, o_ref, *, k, wp, q):
    """Per-sample modulated conv as an implicit GEMM (no im2col, no per-sample weight tensor).

    x_ref   : (1, C, L)   zero-padded input, spatial dims flattened row-major (row stride wp)
    w_ref   : (k*k, O, C) shared (demod-normalised) conv weight, one (O, C) slab per tap
    cmul_ref: (1, 1, C)   per-sample input-channel modulation (style)
    omul_ref: (1, O, 1)   per-sample output-channel scale (demod coef * input_gain)
    b_ref   : (O, 1)      bias (folded in here from the FilteringActLayer)
    o_ref   : (1, O, Q)   conv output, flattened with row stride wp (Q = Ho*wp -> lane-dense)
    """
    cmul = cmul_ref[0]                                   # (1, C)
    o = w_ref.shape[1]
    acc = jnp.zeros((o, q), jnp.float32)
    for i in range(k):                                   # k*k = 9 static taps, unrolled
        for j in range(k):
            off = i * wp + j
            wt = w_ref[i * k + j] * cmul                 # (O, C): style folded onto the tap
            xs = x_ref[0, :, off:off + q]                # (C, Q): shifted slice of VMEM input
            acc = acc + jnp.dot(wt, xs, preferred_element_type=jnp.float32)
    o_ref[0] = acc * omul_ref[0] + b_ref[...]


def modulated_conv_pallas(xflat, wtaps, cmul, omul, bias, *, k, wp, q):
    n, c, l = xflat.shape
    o = wtaps.shape[1]
    kern = partial(_modconv_kernel, k=k, wp=wp, q=q)
    return pl.pallas_call(
        kern,
        out_shape=jax.ShapeDtypeStruct((n, o, q), jnp.float32),
        grid=(n,),
        in_specs=[
            pl.BlockSpec((1, c, l), lambda i: (i, 0, 0)),
            pl.BlockSpec((k * k, o, c), lambda i: (0, 0, 0)),
            pl.BlockSpec((1, 1, c), lambda i: (i, 0, 0)),
            pl.BlockSpec((1, o, 1), lambda i: (i, 0, 0)),
            pl.BlockSpec((o, 1), lambda i: (0, 0)),
        ],
        out_specs=pl.BlockSpec((1, o, q), lambda i: (i, 0, 0)),
        compiler_params=pltpu.CompilerParams(dimension_semantics=("parallel",)),
    )(xflat, wtaps, cmul, omul, bias)


def _filter_kernel(y_ref, u_ref, uw_ref, d_ref, o_ref, *, gain, slope, clamp):
    """Fused up-FIR + leaky-ReLU/gain/clamp + down-FIR for ALL channels of one sample.

    y_ref : (1, C, Ho, Wp) conv output incl. bias (columns >= Wo are garbage, killed by uw zeros)
    u_ref : (Hu, Ho)  H-axis up-FIR;  uw_ref: (Hu, Wp) W-axis up-FIR with zero garbage columns
    d_ref : (So, Hu)  down-FIR (used for both axes);  o_ref: (1, C, So, So)
    """
    y = y_ref[0]                                              # (C, Ho, Wp)
    ch = y.shape[0]
    u = jnp.broadcast_to(u_ref[...], (ch,) + u_ref.shape)     # (C, Hu, Ho)
    uw = jnp.broadcast_to(uw_ref[...], (ch,) + uw_ref.shape)  # (C, Hu, Wp)
    d = jnp.broadcast_to(d_ref[...], (ch,) + d_ref.shape)     # (C, So, Hu)
    t = jnp.einsum('cha,caw->chw', u, y, preferred_element_type=jnp.float32)    # upsample rows
    t = jnp.einsum('chw,cbw->chb', t, uw, preferred_element_type=jnp.float32)   # upsample cols
    t = jnp.where(t >= 0.0, t, t * slope) * gain                                # leaky ReLU + gain
    if clamp is not None:
        t = jnp.clip(t, -clamp, clamp)                                          # clamp
    t = jnp.einsum('coh,chb->cob', d, t, preferred_element_type=jnp.float32)    # downsample rows
    t = jnp.einsum('cob,cpb->cop', t, d, preferred_element_type=jnp.float32)    # downsample cols
    o_ref[0] = t.astype(o_ref.dtype)


def filtered_lrelu_pallas(y, u_mat, uw_mat, d_mat, gain, slope, clamp):
    n, c, ho, wp = y.shape
    hu = u_mat.shape[0]
    so = d_mat.shape[0]
    kern = partial(_filter_kernel, gain=float(gain), slope=float(slope),
                   clamp=None if clamp is None else float(clamp))
    return pl.pallas_call(
        kern,
        out_shape=jax.ShapeDtypeStruct((n, c, so, so), y.dtype),
        grid=(n,),
        in_specs=[
            pl.BlockSpec((1, c, ho, wp), lambda i: (i, 0, 0, 0)),
            pl.BlockSpec((hu, ho), lambda i: (0, 0)),
            pl.BlockSpec((hu, wp), lambda i: (0, 0)),
            pl.BlockSpec((so, hu), lambda i: (0, 0)),
        ],
        out_specs=pl.BlockSpec((1, c, so, so), lambda i: (i, 0, 0, 0)),
        compiler_params=pltpu.CompilerParams(dimension_semantics=("parallel",)),
    )(y, jnp.asarray(u_mat, y.dtype), jnp.asarray(uw_mat, y.dtype), jnp.asarray(d_mat, y.dtype))


# ----------------------------- SynthesisLayer -----------------------------

class SynthesisLayerPallas:
    def __init__(self, key, *, in_channels, out_channels, w_dim, kernel_size, demodulate,
                 eps, conv_clamp, in_size, out_size, in_sampling_rate, out_sampling_rate,
                 in_cutoff, out_cutoff, in_half_width, out_half_width, filter_size,
                 use_radial_filter, act_upsampling):
        assert not use_radial_filter  # TODO(synk): radial jinc filter (scipy.special.j1) unsupported
        self.in_channels = in_channels
        self.out_channels = out_channels
        self.w_dim = w_dim
        self.kernel_size = kernel_size
        self.demodulate = demodulate
        self.eps = eps
        self.conv_clamp = conv_clamp
        self.in_size = in_size
        self.out_size = out_size
        self.act_upsampling = act_upsampling

        k_conv, k_style, k_bias = jax.random.split(key, 3)
        # ModulateConvLayer params.
        self.conv_weight = jax.random.normal(
            k_conv, (out_channels, in_channels, kernel_size, kernel_size), jnp.float32)
        self.conv_wscale = 1.0 / np.sqrt(kernel_size * kernel_size * in_channels)
        self.conv_padding = kernel_size - 1
        # Style DenseLayer params (init_weight_std=1, lr_mul=1, init_bias=1, linear activation).
        self.style_weight = jax.random.normal(k_style, (in_channels, w_dim), jnp.float32)
        self.style_bias = jnp.full((in_channels,), 1.0, jnp.float32)
        self.style_wscale = 1.0 / np.sqrt(w_dim)
        self.style_bscale = 1.0
        # FilteringActLayer params/buffers.
        self.filter_bias = jax.random.normal(k_bias, (out_channels,), jnp.float32) * 0.1
        self.magnitude_ema = jnp.ones((), jnp.float32)

        temp_sr = max(in_sampling_rate, out_sampling_rate) * act_upsampling
        up_factor = int(np.rint(temp_sr / in_sampling_rate))
        assert in_sampling_rate * up_factor == temp_sr
        self.up_factor = up_factor if up_factor > 1 else 1
        self.up_taps = filter_size * up_factor if up_factor > 1 else 1
        up_filter = design_lowpass_filter(self.up_taps, in_cutoff, in_half_width * 2, temp_sr)
        down_factor = int(np.rint(temp_sr / out_sampling_rate))
        assert out_sampling_rate * down_factor == temp_sr
        self.down_factor = down_factor if down_factor > 1 else 1
        self.down_taps = filter_size * down_factor if down_factor > 1 else 1
        down_filter = design_lowpass_filter(self.down_taps, out_cutoff, out_half_width * 2, temp_sr)

        pad_total = (out_size - 1) * self.down_factor + 1
        pad_total -= (in_size + self.conv_padding) * self.up_factor
        pad_total += self.up_taps + self.down_taps - 2
        pad_lo = (pad_total + self.up_factor) // 2
        pad_hi = pad_total - pad_lo
        self.padding = (int(pad_lo), int(pad_hi), int(pad_lo), int(pad_hi))

        # Per-axis upfirdn linear maps (square feature maps, identical pads on H and W).
        hc = in_size + self.conv_padding                 # valid conv-output size (Ho = Wo)
        wp_full = in_size + 2 * self.conv_padding        # conv-output row stride incl. garbage cols
        self.u_mat = upfirdn1d_matrix(hc, up_filter, self.up_factor, 1,
                                      self.padding[2], self.padding[3],
                                      gain=self.up_factor ** 2)
        # W-axis up-FIR acting on the wp-wide (garbage-padded) rows: zero columns discard the
        # garbage lanes, so no separate transposed filter copies need to be shipped.
        self.uw_mat = np.concatenate(
            [self.u_mat, np.zeros((self.u_mat.shape[0], wp_full - hc), np.float32)], axis=1)
        self.d_mat = upfirdn1d_matrix(self.u_mat.shape[0], down_filter, 1, self.down_factor,
                                      0, 0, gain=1.0)
        assert self.d_mat.shape[0] == out_size

    def __call__(self, x, w):
        n, c, h, w_sp = x.shape
        assert c == self.in_channels and h == w_sp == self.in_size
        dtype = x.dtype

        # magnitude EMA is only updated during training (update_ema=True); read-only here.
        input_gain = jax.lax.rsqrt(self.magnitude_ema)

        # Style affine (DenseLayer, linear act): tiny addmm -> plain-JAX glue (per perf review a
        # dedicated Pallas call costs more in launch+DMA than the matmul itself).
        style = (w @ (self.style_weight * self.style_wscale).T
                 + self.style_bias * self.style_bscale)

        # Modulation / demodulation scalars (tiny; plain-JAX glue).  The per-sample modulated
        # weight tensor is never materialised in HBM: style scales the input channels and
        # decoef*input_gain scales the output channels inside the conv kernel.
        weight = self.conv_weight
        if self.demodulate:
            weight = weight * jax.lax.rsqrt(
                jnp.mean(jnp.square(weight), axis=(1, 2, 3), keepdims=True))
            # NOTE: batch-wide style norm -- matches the reference StyleGAN3 semantics.
            _style = style * jax.lax.rsqrt(jnp.mean(jnp.square(style)))
            wsq = jnp.sum(jnp.square(weight), axis=(2, 3))                        # (O, C)
            decoef = jax.lax.rsqrt(jnp.einsum('nc,oc->no', jnp.square(_style), wsq) + self.eps)
            omul = decoef * input_gain                                            # (N, O)
        else:
            _style = style * self.conv_wscale
            omul = jnp.ones((n, self.out_channels), dtype) * input_gain
        cmul = _style.astype(dtype)                                               # (N, C)

        # Grouped per-sample conv (padding = k-1) as an implicit GEMM inside the Pallas kernel.
        k = self.kernel_size
        pad = self.conv_padding
        hp, wp = h + 2 * pad, w_sp + 2 * pad
        ho = h + k - 1
        q = ho * wp                        # flattened conv output (row stride wp, lane-dense)
        l = hp * wp + (k - 1)              # flattened input length needed by the largest tap shift
        xflat = jnp.pad(x, ((0, 0), (0, 0), (pad, pad), (pad, pad))).reshape(n, c, hp * wp)
        xflat = jnp.pad(xflat, ((0, 0), (0, 0), (0, l - hp * wp)))
        wtaps = jnp.transpose(weight, (2, 3, 0, 1)).reshape(
            k * k, self.out_channels, c).astype(dtype)

        y = modulated_conv_pallas(
            xflat, wtaps,
            cmul.reshape(n, 1, c),
            omul.astype(dtype).reshape(n, self.out_channels, 1),
            self.filter_bias.astype(dtype).reshape(self.out_channels, 1),
            k=k, wp=wp, q=q)
        # (N, O, Ho*Wp) -> (N, O, Ho, Wp): layout-compatible split of the minor dim (free).
        y = y.reshape(n, self.out_channels, ho, wp)

        # Filtered leaky-ReLU (up-FIR + lrelu*gain + clamp + down-FIR), one grid step per sample,
        # all channels batched through rank-3 MXU matmuls (bias already folded into the conv).
        if self.act_upsampling > 1:
            gain, slope = float(np.sqrt(2.0)), 0.2
        else:
            gain, slope = 1.0, 1.0
        # TODO(synk): the conv and FIR kernels could be fused further (keeping y in VMEM) once a
        # Mosaic-safe in-kernel un-flatten of the conv accumulator is available.
        out = filtered_lrelu_pallas(y, self.u_mat, self.uw_mat, self.d_mat,
                                    gain, slope, self.conv_clamp)
        return out, style


# ----------------------------- pure-JAX reference (for validation) -----------------------------

def reference_forward(layer, x, w):
    n, c, h, w_sp = x.shape
    input_gain = jax.lax.rsqrt(layer.magnitude_ema)
    style = w @ (layer.style_weight * layer.style_wscale).T + layer.style_bias * layer.style_bscale
    weight = layer.conv_weight
    if layer.demodulate:
        weight = weight * jax.lax.rsqrt(jnp.mean(jnp.square(weight), axis=(1, 2, 3), keepdims=True))
        _style = style * jax.lax.rsqrt(jnp.mean(jnp.square(style)))
    else:
        _style = style * layer.conv_wscale
    wmod = weight[None] * _style[:, None, :, None, None]
    if layer.demodulate:
        decoef = jax.lax.rsqrt(jnp.sum(jnp.square(wmod), axis=(2, 3, 4)) + layer.eps)
        wmod = wmod * decoef[:, :, None, None, None]
    wmod = wmod * input_gain
    pad = layer.conv_padding
    k = layer.kernel_size
    y = jax.lax.conv_general_dilated(
        x.reshape(1, n * c, h, w_sp),
        wmod.reshape(n * layer.out_channels, c, k, k),
        window_strides=(1, 1), padding=[(pad, pad), (pad, pad)],
        dimension_numbers=("NCHW", "OIHW", "NCHW"), feature_group_count=n)
    y = y.reshape(n, layer.out_channels, y.shape[2], y.shape[3])
    if layer.act_upsampling > 1:
        gain, slope = float(np.sqrt(2.0)), 0.2
    else:
        gain, slope = 1.0, 1.0
    u = jnp.asarray(layer.u_mat)
    d = jnp.asarray(layer.d_mat)
    t = y + layer.filter_bias.reshape(1, -1, 1, 1)
    t = jnp.einsum("ah,nchw->ncaw", u, t)
    t = jnp.einsum("bw,ncaw->ncab", u, t)
    t = jnp.where(t >= 0, t, t * slope) * gain
    if layer.conv_clamp is not None:
        clamp = float(layer.conv_clamp)
        t = jnp.clip(t, -clamp, clamp)
    t = jnp.einsum("oa,ncab->ncob", d, t)
    t = jnp.einsum("pb,ncob->ncop", d, t)
    return t, style


# ----------------------------- main -----------------------------

if __name__ == "__main__":
    key = jax.random.PRNGKey(0)
    k_params, k_x, k_w = jax.random.split(key, 3)

    layer = SynthesisLayerPallas(
        k_params,
        in_channels=4, out_channels=4, w_dim=8, kernel_size=3, demodulate=True, eps=1e-8,
        conv_clamp=256.0, in_size=16, out_size=16,
        in_sampling_rate=16, out_sampling_rate=16,
        in_cutoff=8.0, out_cutoff=8.0, in_half_width=4.0, out_half_width=4.0,
        filter_size=6, use_radial_filter=False, act_upsampling=2)

    x = jax.random.normal(k_x, (2, 4, 16, 16), jnp.float32)
    w = jax.random.normal(k_w, (2, 8), jnp.float32)

    out, style = layer(x, w)
    out = jax.block_until_ready(out)
    style = jax.block_until_ready(style)

    ref_out, ref_style = reference_forward(layer, x, w)
    assert out.shape == (2, 4, 16, 16) and style.shape == (2, 4)
    assert bool(jnp.allclose(style, ref_style, rtol=1e-2, atol=1e-2))
    assert bool(jnp.allclose(out, ref_out, rtol=1e-2, atol=1e-2))

    print("KERNEL_OK")
</pallas_src>

<mosaic_0001>
module attributes {stable_mosaic.version = 11 : i64} {
  func.func @_modconv_kernel(%arg0: i32, %arg1: memref<1x4x402xf32, #tpu.memory_space<vmem>>, %arg2: memref<9x4x4xf32, #tpu.memory_space<vmem>>, %arg3: memref<1x1x4xf32, #tpu.memory_space<vmem>>, %arg4: memref<1x4x1xf32, #tpu.memory_space<vmem>>, %arg5: memref<4x1xf32, #tpu.memory_space<vmem>>, %arg6: memref<1x4x360xf32, #tpu.memory_space<vmem>>) attributes {dimension_semantics = [#tpu.dimension_semantics<parallel>], iteration_bounds = array<i64: 2>, scalar_prefetch = 0 : i64, scratch_operands = 0 : i64, tpu.core_type = #tpu.core_type<tc>, window_params = [{transform_indices = @transform_0, window_bounds = array<i64: 1, 4, 402>}, {pipeline_mode = #tpu.pipeline_mode<synchronous>, transform_indices = @transform_1, window_bounds = array<i64: 9, 4, 4>}, {transform_indices = @transform_2, window_bounds = array<i64: 1, 1, 4>}, {transform_indices = @transform_3, window_bounds = array<i64: 1, 4, 1>}, {pipeline_mode = #tpu.pipeline_mode<synchronous>, transform_indices = @transform_4, window_bounds = array<i64: 4, 1>}, {transform_indices = @transform_5, window_bounds = array<i64: 1, 4, 360>}]} {
    %c0 = arith.constant 0 : index
    %c0_0 = arith.constant 0 : index
    %c0_1 = arith.constant 0 : index
    %0 = vector.load %arg3[%c0, %c0_0, %c0_1] : memref<1x1x4xf32, #tpu.memory_space<vmem>>, vector<1x1x4xf32>
    %1 = vector.shape_cast %0 : vector<1x1x4xf32> to vector<1x4xf32>
    %cst = arith.constant 0.000000e+00 : f32
    %2 = vector.broadcast %cst : f32 to vector<4x360xf32>
    %c0_2 = arith.constant 0 : index
    %c0_3 = arith.constant 0 : index
    %c0_4 = arith.constant 0 : index
    %3 = vector.load %arg2[%c0_2, %c0_3, %c0_4] : memref<9x4x4xf32, #tpu.memory_space<vmem>>, vector<1x4x4xf32>
    %4 = vector.shape_cast %3 : vector<1x4x4xf32> to vector<4x4xf32>
    %5 = vector.broadcast %1 : vector<1x4xf32> to vector<4x4xf32>
    %6 = arith.mulf %4, %5 : vector<4x4xf32>
    %c0_5 = arith.constant 0 : index
    %c0_6 = arith.constant 0 : index
    %c0_7 = arith.constant 0 : index
    %7 = vector.load %arg1[%c0_5, %c0_6, %c0_7] : memref<1x4x402xf32, #tpu.memory_space<vmem>>, vector<1x4x360xf32>
    %8 = vector.shape_cast %7 : vector<1x4x360xf32> to vector<4x360xf32>
    %cst_8 = arith.constant dense<0.000000e+00> : vector<4x360xf32>
    %9 = tpu.matmul %6, %8, %cst_8 {dimension_numbers = #tpu.dot_dimension_numbers<[1], [0], [0], [1], [0, 0, 1, 1], [], []>} : vector<4x4xf32>, vector<4x360xf32>, vector<4x360xf32> -> vector<4x360xf32>
    %10 = arith.addf %2, %9 : vector<4x360xf32>
    %c1 = arith.constant 1 : index
    %c0_9 = arith.constant 0 : index
    %c0_10 = arith.constant 0 : index
    %11 = vector.load %arg2[%c1, %c0_9, %c0_10] : memref<9x4x4xf32, #tpu.memory_space<vmem>>, vector<1x4x4xf32>
    %12 = vector.shape_cast %11 : vector<1x4x4xf32> to vector<4x4xf32>
    %13 = vector.broadcast %1 : vector<1x4xf32> to vector<4x4xf32>
    %14 = arith.mulf %12, %13 : vector<4x4xf32>
    %c0_11 = arith.constant 0 : index
    %c0_12 = arith.constant 0 : index
    %c1_13 = arith.constant 1 : index
    %15 = vector.load %arg1[%c0_11, %c0_12, %c1_13] : memref<1x4x402xf32, #tpu.memory_space<vmem>>, vector<1x4x360xf32>
    %16 = vector.shape_cast %15 : vector<1x4x360xf32> to vector<4x360xf32>
    %cst_14 = arith.constant dense<0.000000e+00> : vector<4x360xf32>
    %17 = tpu.matmul %14, %16, %cst_14 {dimension_numbers = #tpu.dot_dimension_numbers<[1], [0], [0], [1], [0, 0, 1, 1], [], []>} : vector<4x4xf32>, vector<4x360xf32>, vector<4x360xf32> -> vector<4x360xf32>
    %18 = arith.addf %10, %17 : vector<4x360xf32>
    %c2 = arith.constant 2 : index
    %c0_15 = arith.constant 0 : index
    %c0_16 = arith.constant 0 : index
    %19 = vector.load %arg2[%c2, %c0_15, %c0_16] : memref<9x4x4xf32, #tpu.memory_space<vmem>>, vector<1x4x4xf32>
    %20 = vector.shape_cast %19 : vector<1x4x4xf32> to vector<4x4xf32>
    %21 = vector.broadcast %1 : vector<1x4xf32> to vector<4x4xf32>
    %22 = arith.mulf %20, %21 : vector<4x4xf32>
    %c0_17 = arith.constant 0 : index
    %c0_18 = arith.constant 0 : index
    %c2_19 = arith.constant 2 : index
    %23 = vector.load %arg1[%c0_17, %c0_18, %c2_19] : memref<1x4x402xf32, #tpu.memory_space<vmem>>, vector<1x4x360xf32>
    %24 = vector.shape_cast %23 : vector<1x4x360xf32> to vector<4x360xf32>
    %cst_20 = arith.constant dense<0.000000e+00> : vector<4x360xf32>
    %25 = tpu.matmul %22, %24, %cst_20 {dimension_numbers = #tpu.dot_dimension_numbers<[1], [0], [0], [1], [0, 0, 1, 1], [], []>} : vector<4x4xf32>, vector<4x360xf32>, vector<4x360xf32> -> vector<4x360xf32>
    %26 = arith.addf %18, %25 : vector<4x360xf32>
    %c3 = arith.constant 3 : index
    %c0_21 = arith.constant 0 : index
    %c0_22 = arith.constant 0 : index
    %27 = vector.load %arg2[%c3, %c0_21, %c0_22] : memref<9x4x4xf32, #tpu.memory_space<vmem>>, vector<1x4x4xf32>
    %28 = vector.shape_cast %27 : vector<1x4x4xf32> to vector<4x4xf32>
    %29 = vector.broadcast %1 : vector<1x4xf32> to vector<4x4xf32>
    %30 = arith.mulf %28, %29 : vector<4x4xf32>
    %c0_23 = arith.constant 0 : index
    %c0_24 = arith.constant 0 : index
    %c20 = arith.constant 20 : index
    %31 = vector.load %arg1[%c0_23, %c0_24, %c20] : memref<1x4x402xf32, #tpu.memory_space<vmem>>, vector<1x4x360xf32>
    %32 = vector.shape_cast %31 : vector<1x4x360xf32> to vector<4x360xf32>
    %cst_25 = arith.constant dense<0.000000e+00> : vector<4x360xf32>
    %33 = tpu.matmul %30, %32, %cst_25 {dimension_numbers = #tpu.dot_dimension_numbers<[1], [0], [0], [1], [0, 0, 1, 1], [], []>} : vector<4x4xf32>, vector<4x360xf32>, vector<4x360xf32> -> vector<4x360xf32>
    %34 = arith.addf %26, %33 : vector<4x360xf32>
    %c4 = arith.constant 4 : index
    %c0_26 = arith.constant 0 : index
    %c0_27 = arith.constant 0 : index
    %35 = vector.load %arg2[%c4, %c0_26, %c0_27] : memref<9x4x4xf32, #tpu.memory_space<vmem>>, vector<1x4x4xf32>
    %36 = vector.shape_cast %35 : vector<1x4x4xf32> to vector<4x4xf32>
    %37 = vector.broadcast %1 : vector<1x4xf32> to vector<4x4xf32>
    %38 = arith.mulf %36, %37 : vector<4x4xf32>
    %c0_28 = arith.constant 0 : index
    %c0_29 = arith.constant 0 : index
    %c21 = arith.constant 21 : index
    %39 = vector.load %arg1[%c0_28, %c0_29, %c21] : memref<1x4x402xf32, #tpu.memory_space<vmem>>, vector<1x4x360xf32>
    %40 = vector.shape_cast %39 : vector<1x4x360xf32> to vector<4x360xf32>
    %cst_30 = arith.constant dense<0.000000e+00> : vector<4x360xf32>
    %41 = tpu.matmul %38, %40, %cst_30 {dimension_numbers = #tpu.dot_dimension_numbers<[1], [0], [0], [1], [0, 0, 1, 1], [], []>} : vector<4x4xf32>, vector<4x360xf32>, vector<4x360xf32> -> vector<4x360xf32>
    %42 = arith.addf %34, %41 : vector<4x360xf32>
    %c5 = arith.constant 5 : index
    %c0_31 = arith.constant 0 : index
    %c0_32 = arith.constant 0 : index
    %43 = vector.load %arg2[%c5, %c0_31, %c0_32] : memref<9x4x4xf32, #tpu.memory_space<vmem>>, vector<1x4x4xf32>
    %44 = vector.shape_cast %43 : vector<1x4x4xf32> to vector<4x4xf32>
    %45 = vector.broadcast %1 : vector<1x4xf32> to vector<4x4xf32>
    %46 = arith.mulf %44, %45 : vector<4x4xf32>
    %c0_33 = arith.constant 0 : index
    %c0_34 = arith.constant 0 : index
    %c22 = arith.constant 22 : index
    %47 = vector.load %arg1[%c0_33, %c0_34, %c22] : memref<1x4x402xf32, #tpu.memory_space<vmem>>, vector<1x4x360xf32>
    %48 = vector.shape_cast %47 : vector<1x4x360xf32> to vector<4x360xf32>
    %cst_35 = arith.constant dense<0.000000e+00> : vector<4x360xf32>
    %49 = tpu.matmul %46, %48, %cst_35 {dimension_numbers = #tpu.dot_dimension_numbers<[1], [0], [0], [1], [0, 0, 1, 1], [], []>} : vector<4x4xf32>, vector<4x360xf32>, vector<4x360xf32> -> vector<4x360xf32>
    %50 = arith.addf %42, %49 : vector<4x360xf32>
    %c6 = arith.constant 6 : index
    %c0_36 = arith.constant 0 : index
    %c0_37 = arith.constant 0 : index
    %51 = vector.load %arg2[%c6, %c0_36, %c0_37] : memref<9x4x4xf32, #tpu.memory_space<vmem>>, vector<1x4x4xf32>
    %52 = vector.shape_cast %51 : vector<1x4x4xf32> to vector<4x4xf32>
    %53 = vector.broadcast %1 : vector<1x4xf32> to vector<4x4xf32>
    %54 = arith.mulf %52, %53 : vector<4x4xf32>
    %c0_38 = arith.constant 0 : index
    %c0_39 = arith.constant 0 : index
    %c40 = arith.constant 40 : index
    %55 = vector.load %arg1[%c0_38, %c0_39, %c40] : memref<1x4x402xf32, #tpu.memory_space<vmem>>, vector<1x4x360xf32>
    %56 = vector.shape_cast %55 : vector<1x4x360xf32> to vector<4x360xf32>
    %cst_40 = arith.constant dense<0.000000e+00> : vector<4x360xf32>
    %57 = tpu.matmul %54, %56, %cst_40 {dimension_numbers = #tpu.dot_dimension_numbers<[1], [0], [0], [1], [0, 0, 1, 1], [], []>} : vector<4x4xf32>, vector<4x360xf32>, vector<4x360xf32> -> vector<4x360xf32>
    %58 = arith.addf %50, %57 : vector<4x360xf32>
    %c7 = arith.constant 7 : index
    %c0_41 = arith.constant 0 : index
    %c0_42 = arith.constant 0 : index
    %59 = vector.load %arg2[%c7, %c0_41, %c0_42] : memref<9x4x4xf32, #tpu.memory_space<vmem>>, vector<1x4x4xf32>
    %60 = vector.shape_cast %59 : vector<1x4x4xf32> to vector<4x4xf32>
    %61 = vector.broadcast %1 : vector<1x4xf32> to vector<4x4xf32>
    %62 = arith.mulf %60, %61 : vector<4x4xf32>
    %c0_43 = arith.constant 0 : index
    %c0_44 = arith.constant 0 : index
    %c41 = arith.constant 41 : index
    %63 = vector.load %arg1[%c0_43, %c0_44, %c41] : memref<1x4x402xf32, #tpu.memory_space<vmem>>, vector<1x4x360xf32>
    %64 = vector.shape_cast %63 : vector<1x4x360xf32> to vector<4x360xf32>
    %cst_45 = arith.constant dense<0.000000e+00> : vector<4x360xf32>
    %65 = tpu.matmul %62, %64, %cst_45 {dimension_numbers = #tpu.dot_dimension_numbers<[1], [0], [0], [1], [0, 0, 1, 1], [], []>} : vector<4x4xf32>, vector<4x360xf32>, vector<4x360xf32> -> vector<4x360xf32>
    %66 = arith.addf %58, %65 : vector<4x360xf32>
    %c8 = arith.constant 8 : index
    %c0_46 = arith.constant 0 : index
    %c0_47 = arith.constant 0 : index
    %67 = vector.load %arg2[%c8, %c0_46, %c0_47] : memref<9x4x4xf32, #tpu.memory_space<vmem>>, vector<1x4x4xf32>
    %68 = vector.shape_cast %67 : vector<1x4x4xf32> to vector<4x4xf32>
    %69 = vector.broadcast %1 : vector<1x4xf32> to vector<4x4xf32>
    %70 = arith.mulf %68, %69 : vector<4x4xf32>
    %c0_48 = arith.constant 0 : index
    %c0_49 = arith.constant 0 : index
    %c42 = arith.constant 42 : index
    %71 = vector.load %arg1[%c0_48, %c0_49, %c42] : memref<1x4x402xf32, #tpu.memory_space<vmem>>, vector<1x4x360xf32>
    %72 = vector.shape_cast %71 : vector<1x4x360xf32> to vector<4x360xf32>
    %cst_50 = arith.constant dense<0.000000e+00> : vector<4x360xf32>
    %73 = tpu.matmul %70, %72, %cst_50 {dimension_numbers = #tpu.dot_dimension_numbers<[1], [0], [0], [1], [0, 0, 1, 1], [], []>} : vector<4x4xf32>, vector<4x360xf32>, vector<4x360xf32> -> vector<4x360xf32>
    %74 = arith.addf %66, %73 : vector<4x360xf32>
    %c0_51 = arith.constant 0 : index
    %c0_52 = arith.constant 0 : index
    %c0_53 = arith.constant 0 : index
    %75 = vector.load %arg4[%c0_51, %c0_52, %c0_53] : memref<1x4x1xf32, #tpu.memory_space<vmem>>, vector<1x4x1xf32>
    %76 = vector.shape_cast %75 : vector<1x4x1xf32> to vector<4x1xf32>
    %77 = vector.broadcast %76 : vector<4x1xf32> to vector<4x360xf32>
    %78 = arith.mulf %74, %77 : vector<4x360xf32>
    %c0_54 = arith.constant 0 : index
    %c0_55 = arith.constant 0 : index
    %79 = vector.load %arg5[%c0_54, %c0_55] : memref<4x1xf32, #tpu.memory_space<vmem>>, vector<4x1xf32>
    %80 = vector.broadcast %79 : vector<4x1xf32> to vector<4x360xf32>
    %81 = arith.addf %78, %80 : vector<4x360xf32>
    %c0_56 = arith.constant 0 : index
    %c0_57 = arith.constant 0 : index
    %c0_58 = arith.constant 0 : index
    %82 = vector.load %arg6[%c0_56, %c0_57, %c0_58] : memref<1x4x360xf32, #tpu.memory_space<vmem>>, vector<1x4x360xf32>
    %83 = vector.shape_cast %82 : vector<1x4x360xf32> to vector<4x360xf32>
    %84 = vector.shape_cast %81 : vector<4x360xf32> to vector<1x4x360xf32>
    tpu.vector_store %arg6[%c0_56, %c0_57, %c0_58], %84 {strides = array<i32>} : memref<1x4x360xf32, #tpu.memory_space<vmem>>, vector<1x4x360xf32>,
    return
  }
  func.func @transform_0(%arg0: i32) -> (i32, i32, i32) {
    %c0_i32 = arith.constant 0 : i32
    %c0_i32_0 = arith.constant 0 : i32
    %c0_i32_1 = arith.constant 0 : i32
    return %arg0, %c0_i32, %c0_i32_0 : i32, i32, i32
  }
  func.func @transform_1(%arg0: i32) -> (i32, i32, i32) {
    %c0_i32 = arith.constant 0 : i32
    %c0_i32_0 = arith.constant 0 : i32
    %c0_i32_1 = arith.constant 0 : i32
    %c0_i32_2 = arith.constant 0 : i32
    return %c0_i32, %c0_i32_0, %c0_i32_1 : i32, i32, i32
  }
  func.func @transform_2(%arg0: i32) -> (i32, i32, i32) {
    %c0_i32 = arith.constant 0 : i32
    %c0_i32_0 = arith.constant 0 : i32
    %c0_i32_1 = arith.constant 0 : i32
    return %arg0, %c0_i32, %c0_i32_0 : i32, i32, i32
  }
  func.func @transform_3(%arg0: i32) -> (i32, i32, i32) {
    %c0_i32 = arith.constant 0 : i32
    %c0_i32_0 = arith.constant 0 : i32
    %c0_i32_1 = arith.constant 0 : i32
    return %arg0, %c0_i32, %c0_i32_0 : i32, i32, i32
  }
  func.func @transform_4(%arg0: i32) -> (i32, i32) {
    %c0_i32 = arith.constant 0 : i32
    %c0_i32_0 = arith.constant 0 : i32
    %c0_i32_1 = arith.constant 0 : i32
    return %c0_i32, %c0_i32_0 : i32, i32
  }
  func.func @transform_5(%arg0: i32) -> (i32, i32, i32) {
    %c0_i32 = arith.constant 0 : i32
    %c0_i32_0 = arith.constant 0 : i32
    %c0_i32_1 = arith.constant 0 : i32
    return %arg0, %c0_i32, %c0_i32_0 : i32, i32, i32
  }
}

</mosaic_0001>

<llo_original>
// kernel: tpu_custom_call.1
$region0: #{tpu_custom_call.1}
  #allocation0 [shape = 'u32[]', space=smem, size = 0x4, offset = 0x4, fixed_abs, tag = 'smem constant byte address 0x4 - core index']
  #allocation1 [shape = 'u32[144,128]{1,0:T(1,128)}', space=vmem, size = 0x12000, scoped, tag = 'internal scratch']
  %s0 = inlined_call_operand.vmem [shape: f32[2,4,402], index: 0, kind: input, shape index: {}]
  %s1 = inlined_call_operand.vmem [shape: f32[9,4,4], index: 1, kind: input, shape index: {}]
  %s2 = inlined_call_operand.vmem [shape: f32[2,1,4], index: 2, kind: input, shape index: {}]
  %s3 = inlined_call_operand.vmem [shape: f32[2,4,1], index: 3, kind: input, shape index: {}]
  %s4 = inlined_call_operand.vmem [shape: f32[4,1], index: 4, kind: input, shape index: {}]
  %s5 = inlined_call_operand.hbm [shape: f32[2,4,360], index: 5, kind: output, shape index: {}]
  %s6 = sld [smem:[#allocation0]]
  $region53: #{tpu_custom_call.1} parent=0
    _
  %s8 = ssub.s32 1, %s6
  %s9 = scalar_select 0, %s8, %s6
  $region1: #{tpu_custom_call.1} parent=0
    #allocation2 [shape = 'u8[12288]{0}', space=vmem, size = 0x3000, scoped, tag = 'output window, operand 0']
    #allocation3 [shape = 's32[2]{0}', space=sflag, size = 0x8, scoped, tag = 'scoped memory for tpu_custom_call.1']
    %10 = vsyncpa [#allocation3], 0
    %s11 = scalar_lea.sflag [#allocation3], 1
    %12 = vsyncpa %s11, 0
    loop: start=0, step=1, limit=4
    $region2: #{tpu_custom_call.1} parent=1 // loop_pre_header
      _
    $region3: #{tpu_custom_call.1} parent=1 // loop_header
      %s14 = sphi 0, %s18
      %p15 = scmp.ge.s32.totalorder %s14, 4
      %s24 = sphi 0, %s26
      %s27 = sphi 0, %s24
      %s28 = sphi 0, %s27
      %s44 = sphi 0, %s28
      %s48 = sphi 0, %s48
      %s50 = sphi 0, %s48
      %s51 = sphi 0, %s50
      %s65 = sphi 0, %s51
      %s71 = sphi 0, %s73
      %s74 = sphi 0, %s71
      %s75 = sphi 0, %s74
      %s91 = sphi 0, %s75
      %s97 = sphi 0, %s99
      %s100 = sphi 0, %s97
      %s101 = sphi 0, %s100
      %s117 = sphi 0, %s101
      %s121 = sphi 0, %s121
      %s123 = sphi 0, %s121
      %s124 = sphi 0, %s123
      %s138 = sphi 0, %s124
      %s144 = sphi 0, %s146
      %s147 = sphi 0, %s144
      %s148 = sphi 0, %s147
      %s164 = sphi 0, %s148
    $region4: #{tpu_custom_call.1} parent=1 // loop_header_branch
      %17 = sbr.rel (%p15) target = $region8
    $region5: #{tpu_custom_call.1} parent=1 // loop_body
      %s19 = ssub.s32 %s14, 1
      %s20 = ssub.s32 %s14, 2
      %s21 = sadd.s32 %s14, 1
      %s22 = ssub.s32 %s14, %s21
      %p23 = scmp.eq.s32.totalorder %s22, 0
      %s25 = sadd.s32 %s24, 1
      %s26 = scalar_select %p23, %s24, %s25
      %p29 = pneg %p23
      %p30 = scmp.eq.s32.totalorder %s14, 1
      %p31 = por %p29, %p30
      %p32 = scmp.ne.s32.totalorder %s24, %s27
      %p33 = scmp.eq.s32.totalorder %s14, 0
      %p34 = por %p32, %p33
      %p35 = scmp.ne.s32.totalorder %s24, %s27
      %p36 = scmp.eq.s32.totalorder %s19, 1
      %p37 = por %p35, %p36
      %p38 = scmp.ne.s32.totalorder %s27, %s28
      %p39 = scmp.eq.s32.totalorder %s19, 0
      %p40 = por %p38, %p39
      %p41 = scmp.ne.s32.totalorder %s27, %s28
      %p42 = scmp.eq.s32.totalorder %s20, 1
      %p43 = por %p41, %p42
      %p45 = scmp.ne.s32.totalorder %s28, %s44
      %p46 = scmp.eq.s32.totalorder %s20, 0
      %p47 = por %p45, %p46
      %s49 = sadd.s32 %s48, 1
      %p52 = scmp.eq.s32.totalorder %s14, 1
      %p53 = scmp.ne.s32.totalorder %s48, %s50
      %p54 = scmp.eq.s32.totalorder %s14, 0
      %p55 = por %p53, %p54
      %p56 = scmp.ne.s32.totalorder %s48, %s50
      %p57 = scmp.eq.s32.totalorder %s19, 1
      %p58 = por %p56, %p57
      %p59 = scmp.ne.s32.totalorder %s50, %s51
      %p60 = scmp.eq.s32.totalorder %s19, 0
      %p61 = por %p59, %p60
      %p62 = scmp.ne.s32.totalorder %s50, %s51
      %p63 = scmp.eq.s32.totalorder %s20, 1
      %p64 = por %p62, %p63
      %p66 = scmp.ne.s32.totalorder %s51, %s65
      %p67 = scmp.eq.s32.totalorder %s20, 0
      %p68 = por %p66, %p67
      %s69 = ssub.s32 %s14, %s21
      %p70 = scmp.eq.s32.totalorder %s69, 0
      %s72 = sadd.s32 %s71, 1
      %s73 = scalar_select %p70, %s71, %s72
      %p76 = pneg %p70
      %p77 = scmp.eq.s32.totalorder %s14, 1
      %p78 = por %p76, %p77
      %p79 = scmp.ne.s32.totalorder %s71, %s74
      %p80 = scmp.eq.s32.totalorder %s14, 0
      %p81 = por %p79, %p80
      %p82 = scmp.ne.s32.totalorder %s71, %s74
      %p83 = scmp.eq.s32.totalorder %s19, 1
      %p84 = por %p82, %p83
      %p85 = scmp.ne.s32.totalorder %s74, %s75
      %p86 = scmp.eq.s32.totalorder %s19, 0
      %p87 = por %p85, %p86
      %p88 = scmp.ne.s32.totalorder %s74, %s75
      %p89 = scmp.eq.s32.totalorder %s20, 1
      %p90 = por %p88, %p89
      %p92 = scmp.ne.s32.totalorder %s75, %s91
      %p93 = scmp.eq.s32.totalorder %s20, 0
      %p94 = por %p92, %p93
      %s95 = ssub.s32 %s14, %s21
      %p96 = scmp.eq.s32.totalorder %s95, 0
      %s98 = sadd.s32 %s97, 1
      %s99 = scalar_select %p96, %s97, %s98
      %p102 = pneg %p96
      %p103 = scmp.eq.s32.totalorder %s14, 1
      %p104 = por %p102, %p103
      %p105 = scmp.ne.s32.totalorder %s97, %s100
      %p106 = scmp.eq.s32.totalorder %s14, 0
      %p107 = por %p105, %p106
      %p108 = scmp.ne.s32.totalorder %s97, %s100
      %p109 = scmp.eq.s32.totalorder %s19, 1
      %p110 = por %p108, %p109
      %p111 = scmp.ne.s32.totalorder %s100, %s101
      %p112 = scmp.eq.s32.totalorder %s19, 0
      %p113 = por %p111, %p112
      %p114 = scmp.ne.s32.totalorder %s100, %s101
      %p115 = scmp.eq.s32.totalorder %s20, 1
      %p116 = por %p114, %p115
      %p118 = scmp.ne.s32.totalorder %s101, %s117
      %p119 = scmp.eq.s32.totalorder %s20, 0
      %p120 = por %p118, %p119
      %s122 = sadd.s32 %s121, 1
      %p125 = scmp.eq.s32.totalorder %s14, 1
      %p126 = scmp.ne.s32.totalorder %s121, %s123
      %p127 = scmp.eq.s32.totalorder %s14, 0
      %p128 = por %p126, %p127
      %p129 = scmp.ne.s32.totalorder %s121, %s123
      %p130 = scmp.eq.s32.totalorder %s19, 1
      %p131 = por %p129, %p130
      %p132 = scmp.ne.s32.totalorder %s123, %s124
      %p133 = scmp.eq.s32.totalorder %s19, 0
      %p134 = por %p132, %p133
      %p135 = scmp.ne.s32.totalorder %s123, %s124
      %p136 = scmp.eq.s32.totalorder %s20, 1
      %p137 = por %p135, %p136
      %p139 = scmp.ne.s32.totalorder %s124, %s138
      %p140 = scmp.eq.s32.totalorder %s20, 0
      %p141 = por %p139, %p140
      %s142 = ssub.s32 %s14, %s21
      %p143 = scmp.eq.s32.totalorder %s142, 0
      %s145 = sadd.s32 %s144, 1
      %s146 = scalar_select %p143, %s144, %s145
      %p149 = pneg %p143
      %p150 = scmp.eq.s32.totalorder %s14, 1
      %p151 = por %p149, %p150
      %p152 = scmp.ne.s32.totalorder %s144, %s147
      %p153 = scmp.eq.s32.totalorder %s14, 0
      %p154 = por %p152, %p153
      %p155 = scmp.ne.s32.totalorder %s144, %s147
      %p156 = scmp.eq.s32.totalorder %s19, 1
      %p157 = por %p155, %p156
      %p158 = scmp.ne.s32.totalorder %s147, %s148
      %p159 = scmp.eq.s32.totalorder %s19, 0
      %p160 = por %p158, %p159
      %p161 = scmp.ne.s32.totalorder %s147, %s148
      %p162 = scmp.eq.s32.totalorder %s20, 1
      %p163 = por %p161, %p162
      %p165 = scmp.ne.s32.totalorder %s148, %s164
      %p166 = scmp.eq.s32.totalorder %s20, 0
      %p167 = por %p165, %p166
      %p168 = scmp.le.s32.totalorder 1, %s14
      %p169 = scmp.lt.s32.totalorder %s14, 3
      %p170 = pnand %p168, %p169
      %p171 = pneg %p170
      // Predicated region
      $region9: #{tpu_custom_call.1} parent=5 // pred_check
        _
      $region10: #{tpu_custom_call.1} parent=5 // pred_check_branch
        %173 = sbr.rel (%p170) target = $region12
      $region11: #{tpu_custom_call.1} parent=5 // pred_region
        %s174 = ssub.s32 %s14, 1
        // Predicated region
        $region13: #{tpu_custom_call.1} parent=11 // pred_check
          %p175 = pneg %p61
        $region14: #{tpu_custom_call.1} parent=11 // pred_check_branch
          %177 = sbr.rel (%p175) target = $region16
        $region15: #{tpu_custom_call.1} parent=11 // pred_region
          _
        $region16: #{tpu_custom_call.1} parent=11 // pred_fallthru
          _
        // Predicated region
        $region17: #{tpu_custom_call.1} parent=11 // pred_check
          %p178 = pneg %p134
        $region18: #{tpu_custom_call.1} parent=11 // pred_check_branch
          %180 = sbr.rel (%p178) target = $region20
        $region19: #{tpu_custom_call.1} parent=11 // pred_region
          _
        $region20: #{tpu_custom_call.1} parent=11 // pred_fallthru
          _
      $region12: #{tpu_custom_call.1} parent=5 // pred_fallthru
        _
      %p181 = scmp.lt.s32.totalorder %s14, 2
      // Predicated region
      $region21: #{tpu_custom_call.1} parent=5 // pred_check
        %p182 = pneg %p181
      $region22: #{tpu_custom_call.1} parent=5 // pred_check_branch
        %184 = sbr.rel (%p182) target = $region24
      $region23: #{tpu_custom_call.1} parent=5 // pred_region
        // Predicated region
        $region25: #{tpu_custom_call.1} parent=23 // pred_check
          %p185 = pneg %p34
        $region26: #{tpu_custom_call.1} parent=23 // pred_check_branch
          %187 = sbr.rel (%p185) target = $region28
        $region27: #{tpu_custom_call.1} parent=23 // pred_region
          %p188 = scmp.lt.s32.totalorder %s14, 1
          %s189 = scalar_select %p188, %s14, 1
          %s190 = smul.addr %s189, 4
          %s191 = smul.addr %s190, 4
          %s192 = scalar_lea.vmem %s0, %s191
        $region28: #{tpu_custom_call.1} parent=23 // pred_fallthru
          _
        // Predicated region
        $region29: #{tpu_custom_call.1} parent=23 // pred_check
          %p193 = pneg %p81
        $region30: #{tpu_custom_call.1} parent=23 // pred_check_branch
          %195 = sbr.rel (%p193) target = $region32
        $region31: #{tpu_custom_call.1} parent=23 // pred_region
          %p196 = scmp.lt.s32.totalorder %s14, 1
          %s197 = scalar_select %p196, %s14, 1
          %s198 = scalar_lea.vmem %s2, %s197
        $region32: #{tpu_custom_call.1} parent=23 // pred_fallthru
          _
        // Predicated region
        $region33: #{tpu_custom_call.1} parent=23 // pred_check
          %p199 = pneg %p107
        $region34: #{tpu_custom_call.1} parent=23 // pred_check_branch
          %201 = sbr.rel (%p199) target = $region36
        $region35: #{tpu_custom_call.1} parent=23 // pred_region
          %p202 = scmp.lt.s32.totalorder %s14, 1
          %s203 = scalar_select %p202, %s14, 1
          %s204 = smul.addr %s203, 4
          %s205 = scalar_lea.vmem %s3, %s204
        $region36: #{tpu_custom_call.1} parent=23 // pred_fallthru
          _
      $region24: #{tpu_custom_call.1} parent=5 // pred_fallthru
        _
      %p206 = scmp.le.s32.totalorder 1, %s14
      %p207 = scmp.lt.s32.totalorder %s14, 3
      %p208 = pnand %p206, %p207
      %p209 = pneg %p208
      // Predicated region
      $region37: #{tpu_custom_call.1} parent=5 // pred_check
        _
      $region38: #{tpu_custom_call.1} parent=5 // pred_check_branch
        %211 = sbr.rel (%p208) target = $region40
      $region39: #{tpu_custom_call.1} parent=5 // pred_region
        %s212 = ssub.s32 %s14, 1
        %p213 = scmp.lt.s32.totalorder %s19, 1
        %s214 = scalar_select %p213, %s19, 1
        %s215 = smul.addr %s214, 4
        %s216 = smul.addr %s215, 4
        %s217 = scalar_lea.vmem %s0, %s216
        %p218 = pneg %p40
        %p219 = pneg %p37
        %p220 = pneg %p61
        %p221 = pneg %p58
        %p222 = scmp.lt.s32.totalorder %s19, 1
        %s223 = scalar_select %p222, %s19, 1
        %s224 = scalar_lea.vmem %s2, %s223
        %p225 = pneg %p87
        %p226 = pneg %p84
        %p227 = scmp.lt.s32.totalorder %s19, 1
        %s228 = scalar_select %p227, %s19, 1
        %s229 = smul.addr %s228, 4
        %s230 = scalar_lea.vmem %s3, %s229
        %p231 = pneg %p113
        %p232 = pneg %p110
        %p233 = pneg %p134
        %p234 = pneg %p131
        %p235 = pneg %p160
        %p236 = pneg %p157
        %s237 = sand.u32 %s147, 1
        %s238 = scalar_lea.sflag [#allocation3], %s237
        %s239 = sand.u32 %s147, 1
        %s240 = smul.addr %s239, 12
        %s241 = scalar_lea.vmem [#allocation2], %s240
        %p242 = scmp.lt.s32.totalorder %s19, 1
        %s243 = scalar_select %p242, %s19, 1
        %s244 = smul.addr %s243, 4
        %s245 = smul.addr %s244, 4
        %s246 = scalar_lea.vmem %s0, %s245
        %p247 = scmp.lt.s32.totalorder %s19, 1
        %s248 = scalar_select %p247, %s19, 1
        %s249 = scalar_lea.vmem %s2, %s248
        %p250 = scmp.lt.s32.totalorder %s19, 1
        %s251 = scalar_select %p250, %s19, 1
        %s252 = smul.addr %s251, 4
        %s253 = scalar_lea.vmem %s3, %s252
        %v254 = vld [vmem:[%s249] sm:$0x1]
        %v255 = vld [vmem:[%s1] sm:$0xf]
        %v257 = vlaneseq
        %v258 = vshrl.u32 %v257, 7
        %v259 = vsub.s32 0, %v258
        %v260 = vrot.slane %v254, %v259
        %v262 = vmul.f32 %v255, %v260
        %v263 = vld [vmem:[%s246] sm:$0xff]
        %v264 = vld [vmem:[%s246 + $0x8] sm:$0xf]
        %s265 = scalar_lea.vmem %s1, 4
        %v266 = vld [vmem:[%s265] sm:$0xf]
        %v267 = vmul.f32 %v266, %v260
        %v270 = vcombine.high %v263, %v263
        %271 = vrot.lane.b32.xlu0 %v263, 127
        %v272 = vpop.permute.xlu0 %271
        %273 = vrot.lane.b32.xlu0 %v270, 127
        %v274 = vpop.permute.xlu0 %273
        %275 = vrot.lane.b32.xlu0 %v264, 127
        %v276 = vpop.permute.xlu0 %275
        %vm277 = vcmask 1039360
        %v278 = vsel %vm277, %v272, %v274
        %v279 = vsel %vm277, %v274, %v276
        %vm280 = vcmask 31744
        %v282 = vsel %vm280, %v267, 0
        %vm284 = vcmask 1043456
        %v285 = vsel %vm284, %v278, 0
        %v287 = vsel %vm284, %v279, 0
        %v289 = vsel %vm284, %v276, 0
        %291 = vmatprep.subr.mxu0 %v287
        %292 = vmatpush1.msra.mxu0 %v285
        %293 = vmatprep.subr.mxu0 0.0
        %294 = vmatpush1.msra.mxu0 0.0
        %295 = vmatprep.subr.mxu0 0.0
        %296 = vmatpush1.msra.mxu0 0.0
        %297 = vmatprep.subr.mxu0 0.0
        %298 = vmatpush1.msra.mxu0 0.0
        %299 = vmatprep.subr.mxu0 0.0
        %300 = vmatpush1.msra.mxu0 0.0
        %301 = vmatprep.subr.mxu0 0.0
        %302 = vmatpush1.msra.mxu0 0.0
        %303 = vmatprep.subr.mxu0 0.0
        %304 = vmatpush1.msra.mxu0 0.0
        %305 = vmatprep.subr.mxu0 0.0
        %306 = vmatpush1.msra.mxu0 0.0
        %307 = vmatprep.subr.mxu0 0.0
        %308 = vmatpush1.msra.mxu0 0.0
        %309 = vmatprep.subr.mxu0 0.0
        %310 = vmatpush1.msra.mxu0 0.0
        %311 = vmatprep.subr.mxu0 0.0
        %312 = vmatpush1.msra.mxu0 0.0
        %313 = vmatprep.subr.mxu0 0.0
        %314 = vmatpush1.msra.mxu0 0.0
        %315 = vmatprep.subr.mxu0 0.0
        %316 = vmatpush1.msra.mxu0 0.0
        %317 = vmatprep.subr.mxu0 0.0
        %318 = vmatpush1.msra.mxu0 0.0
        %319 = vmatprep.subr.mxu0 0.0
        %320 = vmatpush1.msra.mxu0 0.0
        %321 = vmatprep.subr.mxu0 0.0
        %322 = vmatpush1.msra.mxu0 0.0
        %323 = vmatprep.subr.mxu0 0.0
        %324 = vmatpush1.msra.mxu0 0.0
        %325 = vmatprep.subr.mxu0 0.0
        %326 = vmatpush1.msra.mxu0 0.0
        %327 = vmatprep.subr.mxu0 0.0
        %328 = vmatpush1.msra.mxu0 0.0
        %329 = vmatprep.subr.mxu0 0.0
        %330 = vmatpush1.msra.mxu0 0.0
        %331 = vmatprep.subr.mxu0 0.0
        %332 = vmatpush1.msra.mxu0 0.0
        %333 = vmatprep.subr.mxu0 0.0
        %334 = vmatpush1.msra.mxu0 0.0
        %335 = vmatprep.subr.mxu0 0.0
        %336 = vmatpush1.msra.mxu0 0.0
        %337 = vmatprep.subr.mxu0 0.0
        %338 = vmatpush1.msra.mxu0 0.0
        %339 = vmatprep.subr.mxu0 0.0
        %340 = vmatpush1.msra.mxu0 0.0
        %341 = vmatprep.subr.mxu0 0.0
        %342 = vmatpush1.msra.mxu0 0.0
        %343 = vmatprep.subr.mxu0 0.0
        %344 = vmatpush1.msra.mxu0 0.0
        %345 = vmatprep.subr.mxu0 0.0
        %346 = vmatpush1.msra.mxu0 0.0
        %347 = vmatprep.subr.mxu0 0.0
        %348 = vmatpush1.msra.mxu0 0.0
        %349 = vmatprep.subr.mxu0 0.0
        %350 = vmatpush1.msra.mxu0 0.0
        %351 = vmatprep.subr.mxu0 0.0
        %352 = vmatpush1.msra.mxu0 0.0
        %353 = vmatprep.subr.mxu0 0.0
        %354 = vmatpush1.msra.mxu0 0.0
        %355 = vmatprep.mubr.f32.mxu0 0.0
        %356 = vmatmul.mubr.f32.gmra.mrb[0].mxu0 %v282
        %v357 = vpop.f32.mrb[0].mxu0
        %v358 = vadd.f32 0.0, %v357
        %v359 = vpop.f32.mrb[0].mxu0
        %v360 = vadd.f32 0.0, %v359
        %361 = vdwg.mxu0
        %362 = vmatprep.subr.mxu0 0.0
        %363 = vmatpush1.msra.mxu0 %v289
        %364 = vmatprep.subr.mxu0 0.0
        %365 = vmatpush1.msra.mxu0 0.0
        %366 = vmatprep.subr.mxu0 0.0
        %367 = vmatpush1.msra.mxu0 0.0
        %368 = vmatprep.subr.mxu0 0.0
        %369 = vmatpush1.msra.mxu0 0.0
        %370 = vmatprep.subr.mxu0 0.0
        %371 = vmatpush1.msra.mxu0 0.0
        %372 = vmatprep.subr.mxu0 0.0
        %373 = vmatpush1.msra.mxu0 0.0
        %374 = vmatprep.subr.mxu0 0.0
        %375 = vmatpush1.msra.mxu0 0.0
        %376 = vmatprep.subr.mxu0 0.0
        %377 = vmatpush1.msra.mxu0 0.0
        %378 = vmatprep.subr.mxu0 0.0
        %379 = vmatpush1.msra.mxu0 0.0
        %380 = vmatprep.subr.mxu0 0.0
        %381 = vmatpush1.msra.mxu0 0.0
        %382 = vmatprep.subr.mxu0 0.0
        %383 = vmatpush1.msra.mxu0 0.0
        %384 = vmatprep.subr.mxu0 0.0
        %385 = vmatpush1.msra.mxu0 0.0
        %386 = vmatprep.subr.mxu0 0.0
        %387 = vmatpush1.msra.mxu0 0.0
        %388 = vmatprep.subr.mxu0 0.0
        %389 = vmatpush1.msra.mxu0 0.0
        %390 = vmatprep.subr.mxu0 0.0
        %391 = vmatpush1.msra.mxu0 0.0
        %392 = vmatprep.subr.mxu0 0.0
        %393 = vmatpush1.msra.mxu0 0.0
        %394 = vmatprep.subr.mxu0 0.0
        %395 = vmatpush1.msra.mxu0 0.0
        %396 = vmatprep.subr.mxu0 0.0
        %397 = vmatpush1.msra.mxu0 0.0
        %398 = vmatprep.subr.mxu0 0.0
        %399 = vmatpush1.msra.mxu0 0.0
        %400 = vmatprep.subr.mxu0 0.0
        %401 = vmatpush1.msra.mxu0 0.0
        %402 = vmatprep.subr.mxu0 0.0
        %403 = vmatpush1.msra.mxu0 0.0
        %404 = vmatprep.subr.mxu0 0.0
        %405 = vmatpush1.msra.mxu0 0.0
        %406 = vmatprep.subr.mxu0 0.0
        %407 = vmatpush1.msra.mxu0 0.0
        %408 = vmatprep.subr.mxu0 0.0
        %409 = vmatpush1.msra.mxu0 0.0
        %410 = vmatprep.subr.mxu0 0.0
        %411 = vmatpush1.msra.mxu0 0.0
        %412 = vmatprep.subr.mxu0 0.0
        %413 = vmatpush1.msra.mxu0 0.0
        %414 = vmatprep.subr.mxu0 0.0
        %415 = vmatpush1.msra.mxu0 0.0
        %416 = vmatprep.subr.mxu0 0.0
        %417 = vmatpush1.msra.mxu0 0.0
        %418 = vmatprep.subr.mxu0 0.0
        %419 = vmatpush1.msra.mxu0 0.0
        %420 = vmatprep.subr.mxu0 0.0
        %421 = vmatpush1.msra.mxu0 0.0
        %422 = vmatprep.subr.mxu0 0.0
        %423 = vmatpush1.msra.mxu0 0.0
        %424 = vmatprep.subr.mxu0 0.0
        %425 = vmatpush1.msra.mxu0 0.0
        %426 = vmatprep.mubr.f32.mxu0 0.0
        %427 = vmatmul.mubr.f32.gmra.mrb[0].mxu0 %v282
        %v428 = vpop.f32.mrb[0].mxu0
        %v429 = vadd.f32 0.0, %v428
        %v430 = vpop.f32.mrb[0].mxu0
        %431 = vdwg.mxu0
        %v433 = vsel %vm280, %v262, 0
        %v435 = vsel %vm284, %v263, 0
        %v437 = vsel %vm284, %v270, 0
        %v439 = vsel %vm284, %v264, 0
        %441 = vmatprep.subr.mxu0 %v437
        %442 = vmatpush1.msra.mxu0 %v435
        %443 = vmatprep.subr.mxu0 0.0
        %444 = vmatpush1.msra.mxu0 0.0
        %445 = vmatprep.subr.mxu0 0.0
        %446 = vmatpush1.msra.mxu0 0.0
        %447 = vmatprep.subr.mxu0 0.0
        %448 = vmatpush1.msra.mxu0 0.0
        %449 = vmatprep.subr.mxu0 0.0
        %450 = vmatpush1.msra.mxu0 0.0
        %451 = vmatprep.subr.mxu0 0.0
        %452 = vmatpush1.msra.mxu0 0.0
        %453 = vmatprep.subr.mxu0 0.0
        %454 = vmatpush1.msra.mxu0 0.0
        %455 = vmatprep.subr.mxu0 0.0
        %456 = vmatpush1.msra.mxu0 0.0
        %457 = vmatprep.subr.mxu0 0.0
        %458 = vmatpush1.msra.mxu0 0.0
        %459 = vmatprep.subr.mxu0 0.0
        %460 = vmatpush1.msra.mxu0 0.0
        %461 = vmatprep.subr.mxu0 0.0
        %462 = vmatpush1.msra.mxu0 0.0
        %463 = vmatprep.subr.mxu0 0.0
        %464 = vmatpush1.msra.mxu0 0.0
        %465 = vmatprep.subr.mxu0 0.0
        %466 = vmatpush1.msra.mxu0 0.0
        %467 = vmatprep.subr.mxu0 0.0
        %468 = vmatpush1.msra.mxu0 0.0
        %469 = vmatprep.subr.mxu0 0.0
        %470 = vmatpush1.msra.mxu0 0.0
        %471 = vmatprep.subr.mxu0 0.0
        %472 = vmatpush1.msra.mxu0 0.0
        %473 = vmatprep.subr.mxu0 0.0
        %474 = vmatpush1.msra.mxu0 0.0
        %475 = vmatprep.subr.mxu0 0.0
        %476 = vmatpush1.msra.mxu0 0.0
        %477 = vmatprep.subr.mxu0 0.0
        %478 = vmatpush1.msra.mxu0 0.0
        %479 = vmatprep.subr.mxu0 0.0
        %480 = vmatpush1.msra.mxu0 0.0
        %481 = vmatprep.subr.mxu0 0.0
        %482 = vmatpush1.msra.mxu0 0.0
        %483 = vmatprep.subr.mxu0 0.0
        %484 = vmatpush1.msra.mxu0 0.0
        %485 = vmatprep.subr.mxu0 0.0
        %486 = vmatpush1.msra.mxu0 0.0
        %487 = vmatprep.subr.mxu0 0.0
        %488 = vmatpush1.msra.mxu0 0.0
        %489 = vmatprep.subr.mxu0 0.0
        %490 = vmatpush1.msra.mxu0 0.0
        %491 = vmatprep.subr.mxu0 0.0
        %492 = vmatpush1.msra.mxu0 0.0
        %493 = vmatprep.subr.mxu0 0.0
        %494 = vmatpush1.msra.mxu0 0.0
        %495 = vmatprep.subr.mxu0 0.0
        %496 = vmatpush1.msra.mxu0 0.0
        %497 = vmatprep.subr.mxu0 0.0
        %498 = vmatpush1.msra.mxu0 0.0
        %499 = vmatprep.subr.mxu0 0.0
        %500 = vmatpush1.msra.mxu0 0.0
        %501 = vmatprep.subr.mxu0 0.0
        %502 = vmatpush1.msra.mxu0 0.0
        %503 = vmatprep.subr.mxu0 0.0
        %504 = vmatpush1.msra.mxu0 0.0
        %505 = vmatprep.mubr.f32.mxu0 0.0
        %506 = vmatmul.mubr.f32.gmra.mrb[0].mxu0 %v433
        %v507 = vpop.f32.mrb[0].mxu0
        %v508 = vadd.f32 %v358, %v507
        %v509 = vpop.f32.mrb[0].mxu0
        %v510 = vadd.f32 %v360, %v509
        %511 = vdwg.mxu0
        %512 = vmatprep.subr.mxu0 0.0
        %513 = vmatpush1.msra.mxu0 %v439
        %514 = vmatprep.subr.mxu0 0.0
        %515 = vmatpush1.msra.mxu0 0.0
        %516 = vmatprep.subr.mxu0 0.0
        %517 = vmatpush1.msra.mxu0 0.0
        %518 = vmatprep.subr.mxu0 0.0
        %519 = vmatpush1.msra.mxu0 0.0
        %520 = vmatprep.subr.mxu0 0.0
        %521 = vmatpush1.msra.mxu0 0.0
        %522 = vmatprep.subr.mxu0 0.0
        %523 = vmatpush1.msra.mxu0 0.0
        %524 = vmatprep.subr.mxu0 0.0
        %525 = vmatpush1.msra.mxu0 0.0
        %526 = vmatprep.subr.mxu0 0.0
        %527 = vmatpush1.msra.mxu0 0.0
        %528 = vmatprep.subr.mxu0 0.0
        %529 = vmatpush1.msra.mxu0 0.0
        %530 = vmatprep.subr.mxu0 0.0
        %531 = vmatpush1.msra.mxu0 0.0
        %532 = vmatprep.subr.mxu0 0.0
        %533 = vmatpush1.msra.mxu0 0.0
        %534 = vmatprep.subr.mxu0 0.0
        %535 = vmatpush1.msra.mxu0 0.0
        %536 = vmatprep.subr.mxu0 0.0
        %537 = vmatpush1.msra.mxu0 0.0
        %538 = vmatprep.subr.mxu0 0.0
        %539 = vmatpush1.msra.mxu0 0.0
        %540 = vmatprep.subr.mxu0 0.0
        %541 = vmatpush1.msra.mxu0 0.0
        %542 = vmatprep.subr.mxu0 0.0
        %543 = vmatpush1.msra.mxu0 0.0
        %544 = vmatprep.subr.mxu0 0.0
        %545 = vmatpush1.msra.mxu0 0.0
        %546 = vmatprep.subr.mxu0 0.0
        %547 = vmatpush1.msra.mxu0 0.0
        %548 = vmatprep.subr.mxu0 0.0
        %549 = vmatpush1.msra.mxu0 0.0
        %550 = vmatprep.subr.mxu0 0.0
        %551 = vmatpush1.msra.mxu0 0.0
        %552 = vmatprep.subr.mxu0 0.0
        %553 = vmatpush1.msra.mxu0 0.0
        %554 = vmatprep.subr.mxu0 0.0
        %555 = vmatpush1.msra.mxu0 0.0
        %556 = vmatprep.subr.mxu0 0.0
        %557 = vmatpush1.msra.mxu0 0.0
        %558 = vmatprep.subr.mxu0 0.0
        %559 = vmatpush1.msra.mxu0 0.0
        %560 = vmatprep.subr.mxu0 0.0
        %561 = vmatpush1.msra.mxu0 0.0
        %562 = vmatprep.subr.mxu0 0.0
        %563 = vmatpush1.msra.mxu0 0.0
        %564 = vmatprep.subr.mxu0 0.0
        %565 = vmatpush1.msra.mxu0 0.0
        %566 = vmatprep.subr.mxu0 0.0
        %567 = vmatpush1.msra.mxu0 0.0
        %568 = vmatprep.subr.mxu0 0.0
        %569 = vmatpush1.msra.mxu0 0.0
        %570 = vmatprep.subr.mxu0 0.0
        %571 = vmatpush1.msra.mxu0 0.0
        %572 = vmatprep.subr.mxu0 0.0
        %573 = vmatpush1.msra.mxu0 0.0
        %574 = vmatprep.subr.mxu0 0.0
        %575 = vmatpush1.msra.mxu0 0.0
        %576 = vmatprep.mubr.f32.mxu0 0.0
        %577 = vmatmul.mubr.f32.gmra.mrb[0].mxu0 %v433
        %v578 = vpop.f32.mrb[0].mxu0
        %v579 = vadd.f32 %v429, %v578
        %v580 = vpop.f32.mrb[0].mxu0
        %581 = vdwg.mxu0
        %s582 = scalar_lea.vmem %s1, 8
        %v583 = vld [vmem:[%s582] sm:$0xf]
        %v584 = vmul.f32 %v583, %v260
        %v585 = vld [vmem:[%s246] sm:$0xff]
        %v586 = vld [vmem:[%s246 + $0x8] sm:$0xf]
        %v589 = vcombine.high %v585, %v585
        %590 = vrot.lane.b32.xlu0 %v585, 126
        %v591 = vpop.permute.xlu0 %590
        %592 = vrot.lane.b32.xlu0 %v589, 126
        %v593 = vpop.permute.xlu0 %592
        %594 = vrot.lane.b32.xlu0 %v586, 126
        %v595 = vpop.permute.xlu0 %594
        %vm596 = vcmask 1031168
        %v597 = vsel %vm596, %v591, %v593
        %v598 = vsel %vm596, %v593, %v595
        %v600 = vsel %vm280, %v584, 0
        %v602 = vsel %vm284, %v597, 0
        %v604 = vsel %vm284, %v598, 0
        %v606 = vsel %vm284, %v595, 0
        %608 = vmatprep.subr.mxu0 %v604
        %609 = vmatpush1.msra.mxu0 %v602
        %610 = vmatprep.subr.mxu0 0.0
        %611 = vmatpush1.msra.mxu0 0.0
        %612 = vmatprep.subr.mxu0 0.0
        %613 = vmatpush1.msra.mxu0 0.0
        %614 = vmatprep.subr.mxu0 0.0
        %615 = vmatpush1.msra.mxu0 0.0
        %616 = vmatprep.subr.mxu0 0.0
        %617 = vmatpush1.msra.mxu0 0.0
        %618 = vmatprep.subr.mxu0 0.0
        %619 = vmatpush1.msra.mxu0 0.0
        %620 = vmatprep.subr.mxu0 0.0
        %621 = vmatpush1.msra.mxu0 0.0
        %622 = vmatprep.subr.mxu0 0.0
        %623 = vmatpush1.msra.mxu0 0.0
        %624 = vmatprep.subr.mxu0 0.0
        %625 = vmatpush1.msra.mxu0 0.0
        %626 = vmatprep.subr.mxu0 0.0
        %627 = vmatpush1.msra.mxu0 0.0
        %628 = vmatprep.subr.mxu0 0.0
        %629 = vmatpush1.msra.mxu0 0.0
        %630 = vmatprep.subr.mxu0 0.0
        %631 = vmatpush1.msra.mxu0 0.0
        %632 = vmatprep.subr.mxu0 0.0
        %633 = vmatpush1.msra.mxu0 0.0
        %634 = vmatprep.subr.mxu0 0.0
        %635 = vmatpush1.msra.mxu0 0.0
        %636 = vmatprep.subr.mxu0 0.0
        %637 = vmatpush1.msra.mxu0 0.0
        %638 = vmatprep.subr.mxu0 0.0
        %639 = vmatpush1.msra.mxu0 0.0
        %640 = vmatprep.subr.mxu0 0.0
        %641 = vmatpush1.msra.mxu0 0.0
        %642 = vmatprep.subr.mxu0 0.0
        %643 = vmatpush1.msra.mxu0 0.0
        %644 = vmatprep.subr.mxu0 0.0
        %645 = vmatpush1.msra.mxu0 0.0
        %646 = vmatprep.subr.mxu0 0.0
        %647 = vmatpush1.msra.mxu0 0.0
        %648 = vmatprep.subr.mxu0 0.0
        %649 = vmatpush1.msra.mxu0 0.0
        %650 = vmatprep.subr.mxu0 0.0
        %651 = vmatpush1.msra.mxu0 0.0
        %652 = vmatprep.subr.mxu0 0.0
        %653 = vmatpush1.msra.mxu0 0.0
        %654 = vmatprep.subr.mxu0 0.0
        %655 = vmatpush1.msra.mxu0 0.0
        %656 = vmatprep.subr.mxu0 0.0
        %657 = vmatpush1.msra.mxu0 0.0
        %658 = vmatprep.subr.mxu0 0.0
        %659 = vmatpush1.msra.mxu0 0.0
        %660 = vmatprep.subr.mxu0 0.0
        %661 = vmatpush1.msra.mxu0 0.0
        %662 = vmatprep.subr.mxu0 0.0
        %663 = vmatpush1.msra.mxu0 0.0
        %664 = vmatprep.subr.mxu0 0.0
        %665 = vmatpush1.msra.mxu0 0.0
        %666 = vmatprep.subr.mxu0 0.0
        %667 = vmatpush1.msra.mxu0 0.0
        %668 = vmatprep.subr.mxu0 0.0
        %669 = vmatpush1.msra.mxu0 0.0
        %670 = vmatprep.subr.mxu0 0.0
        %671 = vmatpush1.msra.mxu0 0.0
        %672 = vmatprep.mubr.f32.mxu0 0.0
        %673 = vmatmul.mubr.f32.gmra.mrb[0].mxu0 %v600
        %v674 = vpop.f32.mrb[0].mxu0
        %v675 = vadd.f32 0.0, %v674
        %v676 = vpop.f32.mrb[0].mxu0
        %v677 = vadd.f32 0.0, %v676
        %678 = vdwg.mxu0
        %679 = vmatprep.subr.mxu0 0.0
        %680 = vmatpush1.msra.mxu0 %v606
        %681 = vmatprep.subr.mxu0 0.0
        %682 = vmatpush1.msra.mxu0 0.0
        %683 = vmatprep.subr.mxu0 0.0
        %684 = vmatpush1.msra.mxu0 0.0
        %685 = vmatprep.subr.mxu0 0.0
        %686 = vmatpush1.msra.mxu0 0.0
        %687 = vmatprep.subr.mxu0 0.0
        %688 = vmatpush1.msra.mxu0 0.0
        %689 = vmatprep.subr.mxu0 0.0
        %690 = vmatpush1.msra.mxu0 0.0
        %691 = vmatprep.subr.mxu0 0.0
        %692 = vmatpush1.msra.mxu0 0.0
        %693 = vmatprep.subr.mxu0 0.0
        %694 = vmatpush1.msra.mxu0 0.0
        %695 = vmatprep.subr.mxu0 0.0
        %696 = vmatpush1.msra.mxu0 0.0
        %697 = vmatprep.subr.mxu0 0.0
        %698 = vmatpush1.msra.mxu0 0.0
        %699 = vmatprep.subr.mxu0 0.0
        %700 = vmatpush1.msra.mxu0 0.0
        %701 = vmatprep.subr.mxu0 0.0
        %702 = vmatpush1.msra.mxu0 0.0
        %703 = vmatprep.subr.mxu0 0.0
        %704 = vmatpush1.msra.mxu0 0.0
        %705 = vmatprep.subr.mxu0 0.0
        %706 = vmatpush1.msra.mxu0 0.0
        %707 = vmatprep.subr.mxu0 0.0
        %708 = vmatpush1.msra.mxu0 0.0
        %709 = vmatprep.subr.mxu0 0.0
        %710 = vmatpush1.msra.mxu0 0.0
        %711 = vmatprep.subr.mxu0 0.0
        %712 = vmatpush1.msra.mxu0 0.0
        %713 = vmatprep.subr.mxu0 0.0
        %714 = vmatpush1.msra.mxu0 0.0
        %715 = vmatprep.subr.mxu0 0.0
        %716 = vmatpush1.msra.mxu0 0.0
        %717 = vmatprep.subr.mxu0 0.0
        %718 = vmatpush1.msra.mxu0 0.0
        %719 = vmatprep.subr.mxu0 0.0
        %720 = vmatpush1.msra.mxu0 0.0
        %721 = vmatprep.subr.mxu0 0.0
        %722 = vmatpush1.msra.mxu0 0.0
        %723 = vmatprep.subr.mxu0 0.0
        %724 = vmatpush1.msra.mxu0 0.0
        %725 = vmatprep.subr.mxu0 0.0
        %726 = vmatpush1.msra.mxu0 0.0
        %727 = vmatprep.subr.mxu0 0.0
        %728 = vmatpush1.msra.mxu0 0.0
        %729 = vmatprep.subr.mxu0 0.0
        %730 = vmatpush1.msra.mxu0 0.0
        %731 = vmatprep.subr.mxu0 0.0
        %732 = vmatpush1.msra.mxu0 0.0
        %733 = vmatprep.subr.mxu0 0.0
        %734 = vmatpush1.msra.mxu0 0.0
        %735 = vmatprep.subr.mxu0 0.0
        %736 = vmatpush1.msra.mxu0 0.0
        %737 = vmatprep.subr.mxu0 0.0
        %738 = vmatpush1.msra.mxu0 0.0
        %739 = vmatprep.subr.mxu0 0.0
        %740 = vmatpush1.msra.mxu0 0.0
        %741 = vmatprep.subr.mxu0 0.0
        %742 = vmatpush1.msra.mxu0 0.0
        %743 = vmatprep.mubr.f32.mxu0 0.0
        %744 = vmatmul.mubr.f32.gmra.mrb[0].mxu0 %v600
        %v745 = vpop.f32.mrb[0].mxu0
        %v746 = vadd.f32 0.0, %v745
        %v747 = vpop.f32.mrb[0].mxu0
        %748 = vdwg.mxu0
        %v749 = vadd.f32 %v508, %v675
        %v750 = vadd.f32 %v510, %v677
        %v751 = vadd.f32 %v579, %v746
        %s752 = scalar_lea.vmem %s1, 12
        %v753 = vld [vmem:[%s752] sm:$0xf]
        %v754 = vmul.f32 %v753, %v260
        %v755 = vld [vmem:[%s246] sm:$0xff]
        %v756 = vld [vmem:[%s246 + $0x8] sm:$0xf]
        %v759 = vcombine.high %v755, %v755
        %760 = vrot.lane.b32.xlu0 %v755, 108
        %v761 = vpop.permute.xlu0 %760
        %762 = vrot.lane.b32.xlu0 %v759, 108
        %v763 = vpop.permute.xlu0 %762
        %764 = vrot.lane.b32.xlu0 %v756, 108
        %v765 = vpop.permute.xlu0 %764
        %vm766 = vcmask 883712
        %v767 = vsel %vm766, %v761, %v763
        %v768 = vsel %vm766, %v763, %v765
        %v770 = vsel %vm280, %v754, 0
        %v772 = vsel %vm284, %v767, 0
        %v774 = vsel %vm284, %v768, 0
        %v776 = vsel %vm284, %v765, 0
        %778 = vmatprep.subr.mxu0 %v774
        %779 = vmatpush1.msra.mxu0 %v772
        %780 = vmatprep.subr.mxu0 0.0
        %781 = vmatpush1.msra.mxu0 0.0
        %782 = vmatprep.subr.mxu0 0.0
        %783 = vmatpush1.msra.mxu0 0.0
        %784 = vmatprep.subr.mxu0 0.0
        %785 = vmatpush1.msra.mxu0 0.0
        %786 = vmatprep.subr.mxu0 0.0
        %787 = vmatpush1.msra.mxu0 0.0
        %788 = vmatprep.subr.mxu0 0.0
        %789 = vmatpush1.msra.mxu0 0.0
        %790 = vmatprep.subr.mxu0 0.0
        %791 = vmatpush1.msra.mxu0 0.0
        %792 = vmatprep.subr.mxu0 0.0
        %793 = vmatpush1.msra.mxu0 0.0
        %794 = vmatprep.subr.mxu0 0.0
        %795 = vmatpush1.msra.mxu0 0.0
        %796 = vmatprep.subr.mxu0 0.0
        %797 = vmatpush1.msra.mxu0 0.0
        %798 = vmatprep.subr.mxu0 0.0
        %799 = vmatpush1.msra.mxu0 0.0
        %800 = vmatprep.subr.mxu0 0.0
        %801 = vmatpush1.msra.mxu0 0.0
        %802 = vmatprep.subr.mxu0 0.0
        %803 = vmatpush1.msra.mxu0 0.0
        %804 = vmatprep.subr.mxu0 0.0
        %805 = vmatpush1.msra.mxu0 0.0
        %806 = vmatprep.subr.mxu0 0.0
        %807 = vmatpush1.msra.mxu0 0.0
        %808 = vmatprep.subr.mxu0 0.0
        %809 = vmatpush1.msra.mxu0 0.0
        %810 = vmatprep.subr.mxu0 0.0
        %811 = vmatpush1.msra.mxu0 0.0
        %812 = vmatprep.subr.mxu0 0.0
        %813 = vmatpush1.msra.mxu0 0.0
        %814 = vmatprep.subr.mxu0 0.0
        %815 = vmatpush1.msra.mxu0 0.0
        %816 = vmatprep.subr.mxu0 0.0
        %817 = vmatpush1.msra.mxu0 0.0
        %818 = vmatprep.subr.mxu0 0.0
        %819 = vmatpush1.msra.mxu0 0.0
        %820 = vmatprep.subr.mxu0 0.0
        %821 = vmatpush1.msra.mxu0 0.0
        %822 = vmatprep.subr.mxu0 0.0
        %823 = vmatpush1.msra.mxu0 0.0
        %824 = vmatprep.subr.mxu0 0.0
        %825 = vmatpush1.msra.mxu0 0.0
        %826 = vmatprep.subr.mxu0 0.0
        %827 = vmatpush1.msra.mxu0 0.0
        %828 = vmatprep.subr.mxu0 0.0
        %829 = vmatpush1.msra.mxu0 0.0
        %830 = vmatprep.subr.mxu0 0.0
        %831 = vmatpush1.msra.mxu0 0.0
        %832 = vmatprep.subr.mxu0 0.0
        %833 = vmatpush1.msra.mxu0 0.0
        %834 = vmatprep.subr.mxu0 0.0
        %835 = vmatpush1.msra.mxu0 0.0
        %836 = vmatprep.subr.mxu0 0.0
        %837 = vmatpush1.msra.mxu0 0.0
        %838 = vmatprep.subr.mxu0 0.0
        %839 = vmatpush1.msra.mxu0 0.0
        %840 = vmatprep.subr.mxu0 0.0
        %841 = vmatpush1.msra.mxu0 0.0
        %842 = vmatprep.mubr.f32.mxu0 0.0
        %843 = vmatmul.mubr.f32.gmra.mrb[0].mxu0 %v770
        %v844 = vpop.f32.mrb[0].mxu0
        %v845 = vadd.f32 0.0, %v844
        %v846 = vpop.f32.mrb[0].mxu0
        %v847 = vadd.f32 0.0, %v846
        %848 = vdwg.mxu0
        %849 = vmatprep.subr.mxu0 0.0
        %850 = vmatpush1.msra.mxu0 %v776
        %851 = vmatprep.subr.mxu0 0.0
        %852 = vmatpush1.msra.mxu0 0.0
        %853 = vmatprep.subr.mxu0 0.0
        %854 = vmatpush1.msra.mxu0 0.0
        %855 = vmatprep.subr.mxu0 0.0
        %856 = vmatpush1.msra.mxu0 0.0
        %857 = vmatprep.subr.mxu0 0.0
        %858 = vmatpush1.msra.mxu0 0.0
        %859 = vmatprep.subr.mxu0 0.0
        %860 = vmatpush1.msra.mxu0 0.0
        %861 = vmatprep.subr.mxu0 0.0
        %862 = vmatpush1.msra.mxu0 0.0
        %863 = vmatprep.subr.mxu0 0.0
        %864 = vmatpush1.msra.mxu0 0.0
        %865 = vmatprep.subr.mxu0 0.0
        %866 = vmatpush1.msra.mxu0 0.0
        %867 = vmatprep.subr.mxu0 0.0
        %868 = vmatpush1.msra.mxu0 0.0
        %869 = vmatprep.subr.mxu0 0.0
        %870 = vmatpush1.msra.mxu0 0.0
        %871 = vmatprep.subr.mxu0 0.0
        %872 = vmatpush1.msra.mxu0 0.0
        %873 = vmatprep.subr.mxu0 0.0
        %874 = vmatpush1.msra.mxu0 0.0
        %875 = vmatprep.subr.mxu0 0.0
        %876 = vmatpush1.msra.mxu0 0.0
        %877 = vmatprep.subr.mxu0 0.0
        %878 = vmatpush1.msra.mxu0 0.0
        %879 = vmatprep.subr.mxu0 0.0
        %880 = vmatpush1.msra.mxu0 0.0
        %881 = vmatprep.subr.mxu0 0.0
        %882 = vmatpush1.msra.mxu0 0.0
        %883 = vmatprep.subr.mxu0 0.0
        %884 = vmatpush1.msra.mxu0 0.0
        %885 = vmatprep.subr.mxu0 0.0
        %886 = vmatpush1.msra.mxu0 0.0
        %887 = vmatprep.subr.mxu0 0.0
        %888 = vmatpush1.msra.mxu0 0.0
        %889 = vmatprep.subr.mxu0 0.0
        %890 = vmatpush1.msra.mxu0 0.0
        %891 = vmatprep.subr.mxu0 0.0
        %892 = vmatpush1.msra.mxu0 0.0
        %893 = vmatprep.subr.mxu0 0.0
        %894 = vmatpush1.msra.mxu0 0.0
        %895 = vmatprep.subr.mxu0 0.0
        %896 = vmatpush1.msra.mxu0 0.0
        %897 = vmatprep.subr.mxu0 0.0
        %898 = vmatpush1.msra.mxu0 0.0
        %899 = vmatprep.subr.mxu0 0.0
        %900 = vmatpush1.msra.mxu0 0.0
        %901 = vmatprep.subr.mxu0 0.0
        %902 = vmatpush1.msra.mxu0 0.0
        %903 = vmatprep.subr.mxu0 0.0
        %904 = vmatpush1.msra.mxu0 0.0
        %905 = vmatprep.subr.mxu0 0.0
        %906 = vmatpush1.msra.mxu0 0.0
        %907 = vmatprep.subr.mxu0 0.0
        %908 = vmatpush1.msra.mxu0 0.0
        %909 = vmatprep.subr.mxu0 0.0
        %910 = vmatpush1.msra.mxu0 0.0
        %911 = vmatprep.subr.mxu0 0.0
        %912 = vmatpush1.msra.mxu0 0.0
        %913 = vmatprep.mubr.f32.mxu0 0.0
        %914 = vmatmul.mubr.f32.gmra.mrb[0].mxu0 %v770
        %v915 = vpop.f32.mrb[0].mxu0
        %v916 = vadd.f32 0.0, %v915
        %v917 = vpop.f32.mrb[0].mxu0
        %918 = vdwg.mxu0
        %v919 = vadd.f32 %v749, %v845
        %v920 = vadd.f32 %v750, %v847
        %v921 = vadd.f32 %v751, %v916
        %s922 = scalar_lea.vmem %s1, 16
        %v923 = vld [vmem:[%s922] sm:$0xf]
        %v924 = vmul.f32 %v923, %v260
        %v925 = vld [vmem:[%s246] sm:$0xff]
        %v926 = vld [vmem:[%s246 + $0x8] sm:$0xf]
        %v929 = vcombine.high %v925, %v925
        %930 = vrot.lane.b32.xlu0 %v925, 107
        %v931 = vpop.permute.xlu0 %930
        %932 = vrot.lane.b32.xlu0 %v929, 107
        %v933 = vpop.permute.xlu0 %932
        %934 = vrot.lane.b32.xlu0 %v926, 107
        %v935 = vpop.permute.xlu0 %934
        %vm936 = vcmask 875520
        %v937 = vsel %vm936, %v931, %v933
        %v938 = vsel %vm936, %v933, %v935
        %v940 = vsel %vm280, %v924, 0
        %v942 = vsel %vm284, %v937, 0
        %v944 = vsel %vm284, %v938, 0
        %v946 = vsel %vm284, %v935, 0
        %948 = vmatprep.subr.mxu0 %v944
        %949 = vmatpush1.msra.mxu0 %v942
        %950 = vmatprep.subr.mxu0 0.0
        %951 = vmatpush1.msra.mxu0 0.0
        %952 = vmatprep.subr.mxu0 0.0
        %953 = vmatpush1.msra.mxu0 0.0
        %954 = vmatprep.subr.mxu0 0.0
        %955 = vmatpush1.msra.mxu0 0.0
        %956 = vmatprep.subr.mxu0 0.0
        %957 = vmatpush1.msra.mxu0 0.0
        %958 = vmatprep.subr.mxu0 0.0
        %959 = vmatpush1.msra.mxu0 0.0
        %960 = vmatprep.subr.mxu0 0.0
        %961 = vmatpush1.msra.mxu0 0.0
        %962 = vmatprep.subr.mxu0 0.0
        %963 = vmatpush1.msra.mxu0 0.0
        %964 = vmatprep.subr.mxu0 0.0
        %965 = vmatpush1.msra.mxu0 0.0
        %966 = vmatprep.subr.mxu0 0.0
        %967 = vmatpush1.msra.mxu0 0.0
        %968 = vmatprep.subr.mxu0 0.0
        %969 = vmatpush1.msra.mxu0 0.0
        %970 = vmatprep.subr.mxu0 0.0
        %971 = vmatpush1.msra.mxu0 0.0
        %972 = vmatprep.subr.mxu0 0.0
        %973 = vmatpush1.msra.mxu0 0.0
        %974 = vmatprep.subr.mxu0 0.0
        %975 = vmatpush1.msra.mxu0 0.0
        %976 = vmatprep.subr.mxu0 0.0
        %977 = vmatpush1.msra.mxu0 0.0
        %978 = vmatprep.subr.mxu0 0.0
        %979 = vmatpush1.msra.mxu0 0.0
        %980 = vmatprep.subr.mxu0 0.0
        %981 = vmatpush1.msra.mxu0 0.0
        %982 = vmatprep.subr.mxu0 0.0
        %983 = vmatpush1.msra.mxu0 0.0
        %984 = vmatprep.subr.mxu0 0.0
        %985 = vmatpush1.msra.mxu0 0.0
        %986 = vmatprep.subr.mxu0 0.0
        %987 = vmatpush1.msra.mxu0 0.0
        %988 = vmatprep.subr.mxu0 0.0
        %989 = vmatpush1.msra.mxu0 0.0
        %990 = vmatprep.subr.mxu0 0.0
        %991 = vmatpush1.msra.mxu0 0.0
        %992 = vmatprep.subr.mxu0 0.0
        %993 = vmatpush1.msra.mxu0 0.0
        %994 = vmatprep.subr.mxu0 0.0
        %995 = vmatpush1.msra.mxu0 0.0
        %996 = vmatprep.subr.mxu0 0.0
        %997 = vmatpush1.msra.mxu0 0.0
        %998 = vmatprep.subr.mxu0 0.0
        %999 = vmatpush1.msra.mxu0 0.0
        %1000 = vmatprep.subr.mxu0 0.0
        %1001 = vmatpush1.msra.mxu0 0.0
        %1002 = vmatprep.subr.mxu0 0.0
        %1003 = vmatpush1.msra.mxu0 0.0
        %1004 = vmatprep.subr.mxu0 0.0
        %1005 = vmatpush1.msra.mxu0 0.0
        %1006 = vmatprep.subr.mxu0 0.0
        %1007 = vmatpush1.msra.mxu0 0.0
        %1008 = vmatprep.subr.mxu0 0.0
        %1009 = vmatpush1.msra.mxu0 0.0
        %1010 = vmatprep.subr.mxu0 0.0
        %1011 = vmatpush1.msra.mxu0 0.0
        %1012 = vmatprep.mubr.f32.mxu0 0.0
        %1013 = vmatmul.mubr.f32.gmra.mrb[0].mxu0 %v940
        %v1014 = vpop.f32.mrb[0].mxu0
        %v1015 = vadd.f32 0.0, %v1014
        %v1016 = vpop.f32.mrb[0].mxu0
        %v1017 = vadd.f32 0.0, %v1016
        %1018 = vdwg.mxu0
        %1019 = vmatprep.subr.mxu0 0.0
        %1020 = vmatpush1.msra.mxu0 %v946
        %1021 = vmatprep.subr.mxu0 0.0
        %1022 = vmatpush1.msra.mxu0 0.0
        %1023 = vmatprep.subr.mxu0 0.0
        %1024 = vmatpush1.msra.mxu0 0.0
        %1025 = vmatprep.subr.mxu0 0.0
        %1026 = vmatpush1.msra.mxu0 0.0
        %1027 = vmatprep.subr.mxu0 0.0
        %1028 = vmatpush1.msra.mxu0 0.0
        %1029 = vmatprep.subr.mxu0 0.0
        %1030 = vmatpush1.msra.mxu0 0.0
        %1031 = vmatprep.subr.mxu0 0.0
        %1032 = vmatpush1.msra.mxu0 0.0
        %1033 = vmatprep.subr.mxu0 0.0
        %1034 = vmatpush1.msra.mxu0 0.0
        %1035 = vmatprep.subr.mxu0 0.0
        %1036 = vmatpush1.msra.mxu0 0.0
        %1037 = vmatprep.subr.mxu0 0.0
        %1038 = vmatpush1.msra.mxu0 0.0
        %1039 = vmatprep.subr.mxu0 0.0
        %1040 = vmatpush1.msra.mxu0 0.0
        %1041 = vmatprep.subr.mxu0 0.0
        %1042 = vmatpush1.msra.mxu0 0.0
        %1043 = vmatprep.subr.mxu0 0.0
        %1044 = vmatpush1.msra.mxu0 0.0
        %1045 = vmatprep.subr.mxu0 0.0
        %1046 = vmatpush1.msra.mxu0 0.0
        %1047 = vmatprep.subr.mxu0 0.0
        %1048 = vmatpush1.msra.mxu0 0.0
        %1049 = vmatprep.subr.mxu0 0.0
        %1050 = vmatpush1.msra.mxu0 0.0
        %1051 = vmatprep.subr.mxu0 0.0
        %1052 = vmatpush1.msra.mxu0 0.0
        %1053 = vmatprep.subr.mxu0 0.0
        %1054 = vmatpush1.msra.mxu0 0.0
        %1055 = vmatprep.subr.mxu0 0.0
        %1056 = vmatpush1.msra.mxu0 0.0
        %1057 = vmatprep.subr.mxu0 0.0
        %1058 = vmatpush1.msra.mxu0 0.0
        %1059 = vmatprep.subr.mxu0 0.0
        %1060 = vmatpush1.msra.mxu0 0.0
        %1061 = vmatprep.subr.mxu0 0.0
        %1062 = vmatpush1.msra.mxu0 0.0
        %1063 = vmatprep.subr.mxu0 0.0
        %1064 = vmatpush1.msra.mxu0 0.0
        %1065 = vmatprep.subr.mxu0 0.0
        %1066 = vmatpush1.msra.mxu0 0.0
        %1067 = vmatprep.subr.mxu0 0.0
        %1068 = vmatpush1.msra.mxu0 0.0
        %1069 = vmatprep.subr.mxu0 0.0
        %1070 = vmatpush1.msra.mxu0 0.0
        %1071 = vmatprep.subr.mxu0 0.0
        %1072 = vmatpush1.msra.mxu0 0.0
        %1073 = vmatprep.subr.mxu0 0.0
        %1074 = vmatpush1.msra.mxu0 0.0
        %1075 = vmatprep.subr.mxu0 0.0
        %1076 = vmatpush1.msra.mxu0 0.0
        %1077 = vmatprep.subr.mxu0 0.0
        %1078 = vmatpush1.msra.mxu0 0.0
        %1079 = vmatprep.subr.mxu0 0.0
        %1080 = vmatpush1.msra.mxu0 0.0
        %1081 = vmatprep.subr.mxu0 0.0
        %1082 = vmatpush1.msra.mxu0 0.0
        %1083 = vmatprep.mubr.f32.mxu0 0.0
        %1084 = vmatmul.mubr.f32.gmra.mrb[0].mxu0 %v940
        %v1085 = vpop.f32.mrb[0].mxu0
        %v1086 = vadd.f32 0.0, %v1085
        %v1087 = vpop.f32.mrb[0].mxu0
        %1088 = vdwg.mxu0
        %v1089 = vadd.f32 %v919, %v1015
        %v1090 = vadd.f32 %v920, %v1017
        %v1091 = vadd.f32 %v921, %v1086
        %s1092 = scalar_lea.vmem %s1, 20
        %v1093 = vld [vmem:[%s1092] sm:$0xf]
        %v1094 = vmul.f32 %v1093, %v260
        %v1095 = vld [vmem:[%s246] sm:$0xff]
        %v1096 = vld [vmem:[%s246 + $0x8] sm:$0xf]
        %v1099 = vcombine.high %v1095, %v1095
        %1100 = vrot.lane.b32.xlu0 %v1095, 106
        %v1101 = vpop.permute.xlu0 %1100
        %1102 = vrot.lane.b32.xlu0 %v1099, 106
        %v1103 = vpop.permute.xlu0 %1102
        %1104 = vrot.lane.b32.xlu0 %v1096, 106
        %v1105 = vpop.permute.xlu0 %1104
        %vm1106 = vcmask 867328
        %v1107 = vsel %vm1106, %v1101, %v1103
        %v1108 = vsel %vm1106, %v1103, %v1105
        %v1110 = vsel %vm280, %v1094, 0
        %v1112 = vsel %vm284, %v1107, 0
        %v1114 = vsel %vm284, %v1108, 0
        %v1116 = vsel %vm284, %v1105, 0
        %1118 = vmatprep.subr.mxu0 %v1114
        %1119 = vmatpush1.msra.mxu0 %v1112
        %1120 = vmatprep.subr.mxu0 0.0
        %1121 = vmatpush1.msra.mxu0 0.0
        %1122 = vmatprep.subr.mxu0 0.0
        %1123 = vmatpush1.msra.mxu0 0.0
        %1124 = vmatprep.subr.mxu0 0.0
        %1125 = vmatpush1.msra.mxu0 0.0
        %1126 = vmatprep.subr.mxu0 0.0
        %1127 = vmatpush1.msra.mxu0 0.0
        %1128 = vmatprep.subr.mxu0 0.0
        %1129 = vmatpush1.msra.mxu0 0.0
        %1130 = vmatprep.subr.mxu0 0.0
        %1131 = vmatpush1.msra.mxu0 0.0
        %1132 = vmatprep.subr.mxu0 0.0
        %1133 = vmatpush1.msra.mxu0 0.0
        %1134 = vmatprep.subr.mxu0 0.0
        %1135 = vmatpush1.msra.mxu0 0.0
        %1136 = vmatprep.subr.mxu0 0.0
        %1137 = vmatpush1.msra.mxu0 0.0
        %1138 = vmatprep.subr.mxu0 0.0
        %1139 = vmatpush1.msra.mxu0 0.0
        %1140 = vmatprep.subr.mxu0 0.0
        %1141 = vmatpush1.msra.mxu0 0.0
        %1142 = vmatprep.subr.mxu0 0.0
        %1143 = vmatpush1.msra.mxu0 0.0
        %1144 = vmatprep.subr.mxu0 0.0
        %1145 = vmatpush1.msra.mxu0 0.0
        %1146 = vmatprep.subr.mxu0 0.0
        %1147 = vmatpush1.msra.mxu0 0.0
        %1148 = vmatprep.subr.mxu0 0.0
        %1149 = vmatpush1.msra.mxu0 0.0
        %1150 = vmatprep.subr.mxu0 0.0
        %1151 = vmatpush1.msra.mxu0 0.0
        %1152 = vmatprep.subr.mxu0 0.0
        %1153 = vmatpush1.msra.mxu0 0.0
        %1154 = vmatprep.subr.mxu0 0.0
        %1155 = vmatpush1.msra.mxu0 0.0
        %1156 = vmatprep.subr.mxu0 0.0
        %1157 = vmatpush1.msra.mxu0 0.0
        %1158 = vmatprep.subr.mxu0 0.0
        %1159 = vmatpush1.msra.mxu0 0.0
        %1160 = vmatprep.subr.mxu0 0.0
        %1161 = vmatpush1.msra.mxu0 0.0
        %1162 = vmatprep.subr.mxu0 0.0
        %1163 = vmatpush1.msra.mxu0 0.0
        %1164 = vmatprep.subr.mxu0 0.0
        %1165 = vmatpush1.msra.mxu0 0.0
        %1166 = vmatprep.subr.mxu0 0.0
        %1167 = vmatpush1.msra.mxu0 0.0
        %1168 = vmatprep.subr.mxu0 0.0
        %1169 = vmatpush1.msra.mxu0 0.0
        %1170 = vmatprep.subr.mxu0 0.0
        %1171 = vmatpush1.msra.mxu0 0.0
        %1172 = vmatprep.subr.mxu0 0.0
        %1173 = vmatpush1.msra.mxu0 0.0
        %1174 = vmatprep.subr.mxu0 0.0
        %1175 = vmatpush1.msra.mxu0 0.0
        %1176 = vmatprep.subr.mxu0 0.0
        %1177 = vmatpush1.msra.mxu0 0.0
        %1178 = vmatprep.subr.mxu0 0.0
        %1179 = vmatpush1.msra.mxu0 0.0
        %1180 = vmatprep.subr.mxu0 0.0
        %1181 = vmatpush1.msra.mxu0 0.0
        %1182 = vmatprep.mubr.f32.mxu0 0.0
        %1183 = vmatmul.mubr.f32.gmra.mrb[0].mxu0 %v1110
        %v1184 = vpop.f32.mrb[0].mxu0
        %v1185 = vadd.f32 0.0, %v1184
        %v1186 = vpop.f32.mrb[0].mxu0
        %v1187 = vadd.f32 0.0, %v1186
        %1188 = vdwg.mxu0
        %1189 = vmatprep.subr.mxu0 0.0
        %1190 = vmatpush1.msra.mxu0 %v1116
        %1191 = vmatprep.subr.mxu0 0.0
        %1192 = vmatpush1.msra.mxu0 0.0
        %1193 = vmatprep.subr.mxu0 0.0
        %1194 = vmatpush1.msra.mxu0 0.0
        %1195 = vmatprep.subr.mxu0 0.0
        %1196 = vmatpush1.msra.mxu0 0.0
        %1197 = vmatprep.subr.mxu0 0.0
        %1198 = vmatpush1.msra.mxu0 0.0
        %1199 = vmatprep.subr.mxu0 0.0
        %1200 = vmatpush1.msra.mxu0 0.0
        %1201 = vmatprep.subr.mxu0 0.0
        %1202 = vmatpush1.msra.mxu0 0.0
        %1203 = vmatprep.subr.mxu0 0.0
        %1204 = vmatpush1.msra.mxu0 0.0
        %1205 = vmatprep.subr.mxu0 0.0
        %1206 = vmatpush1.msra.mxu0 0.0
        %1207 = vmatprep.subr.mxu0 0.0
        %1208 = vmatpush1.msra.mxu0 0.0
        %1209 = vmatprep.subr.mxu0 0.0
        %1210 = vmatpush1.msra.mxu0 0.0
        %1211 = vmatprep.subr.mxu0 0.0
        %1212 = vmatpush1.msra.mxu0 0.0
        %1213 = vmatprep.subr.mxu0 0.0
        %1214 = vmatpush1.msra.mxu0 0.0
        %1215 = vmatprep.subr.mxu0 0.0
        %1216 = vmatpush1.msra.mxu0 0.0
        %1217 = vmatprep.subr.mxu0 0.0
        %1218 = vmatpush1.msra.mxu0 0.0
        %1219 = vmatprep.subr.mxu0 0.0
        %1220 = vmatpush1.msra.mxu0 0.0
        %1221 = vmatprep.subr.mxu0 0.0
        %1222 = vmatpush1.msra.mxu0 0.0
        %1223 = vmatprep.subr.mxu0 0.0
        %1224 = vmatpush1.msra.mxu0 0.0
        %1225 = vmatprep.subr.mxu0 0.0
        %1226 = vmatpush1.msra.mxu0 0.0
        %1227 = vmatprep.subr.mxu0 0.0
        %1228 = vmatpush1.msra.mxu0 0.0
        %1229 = vmatprep.subr.mxu0 0.0
        %1230 = vmatpush1.msra.mxu0 0.0
        %1231 = vmatprep.subr.mxu0 0.0
        %1232 = vmatpush1.msra.mxu0 0.0
        %1233 = vmatprep.subr.mxu0 0.0
        %1234 = vmatpush1.msra.mxu0 0.0
        %1235 = vmatprep.subr.mxu0 0.0
        %1236 = vmatpush1.msra.mxu0 0.0
        %1237 = vmatprep.subr.mxu0 0.0
        %1238 = vmatpush1.msra.mxu0 0.0
        %1239 = vmatprep.subr.mxu0 0.0
        %1240 = vmatpush1.msra.mxu0 0.0
        %1241 = vmatprep.subr.mxu0 0.0
        %1242 = vmatpush1.msra.mxu0 0.0
        %1243 = vmatprep.subr.mxu0 0.0
        %1244 = vmatpush1.msra.mxu0 0.0
        %1245 = vmatprep.subr.mxu0 0.0
        %1246 = vmatpush1.msra.mxu0 0.0
        %1247 = vmatprep.subr.mxu0 0.0
        %1248 = vmatpush1.msra.mxu0 0.0
        %1249 = vmatprep.subr.mxu0 0.0
        %1250 = vmatpush1.msra.mxu0 0.0
        %1251 = vmatprep.subr.mxu0 0.0
        %1252 = vmatpush1.msra.mxu0 0.0
        %1253 = vmatprep.mubr.f32.mxu0 0.0
        %1254 = vmatmul.mubr.f32.gmra.mrb[0].mxu0 %v1110
        %v1255 = vpop.f32.mrb[0].mxu0
        %v1256 = vadd.f32 0.0, %v1255
        %v1257 = vpop.f32.mrb[0].mxu0
        %1258 = vdwg.mxu0
        %v1259 = vadd.f32 %v1089, %v1185
        %v1260 = vadd.f32 %v1090, %v1187
        %v1261 = vadd.f32 %v1091, %v1256
        %s1262 = scalar_lea.vmem %s1, 24
        %v1263 = vld [vmem:[%s1262] sm:$0xf]
        %v1264 = vmul.f32 %v1263, %v260
        %v1265 = vld [vmem:[%s246] sm:$0xff]
        %v1266 = vld [vmem:[%s246 + $0x8] sm:$0xff]
        %v1269 = vcombine.high %v1265, %v1265
        %v1270 = vcombine.high %v1266, %v1266
        %1271 = vrot.lane.b32.xlu0 %v1265, 88
        %v1272 = vpop.permute.xlu0 %1271
        %1273 = vrot.lane.b32.xlu0 %v1269, 88
        %v1274 = vpop.permute.xlu0 %1273
        %1275 = vrot.lane.b32.xlu0 %v1266, 88
        %v1276 = vpop.permute.xlu0 %1275
        %1277 = vrot.lane.b32.xlu0 %v1270, 88
        %v1278 = vpop.permute.xlu0 %1277
        %vm1279 = vcmask 719872
        %v1280 = vsel %vm1279, %v1272, %v1274
        %v1281 = vsel %vm1279, %v1274, %v1276
        %v1282 = vsel %vm1279, %v1276, %v1278
        %v1284 = vsel %vm280, %v1264, 0
        %v1286 = vsel %vm284, %v1280, 0
        %v1288 = vsel %vm284, %v1281, 0
        %v1290 = vsel %vm284, %v1282, 0
        %1292 = vmatprep.subr.mxu0 %v1288
        %1293 = vmatpush1.msra.mxu0 %v1286
        %1294 = vmatprep.subr.mxu0 0.0
        %1295 = vmatpush1.msra.mxu0 0.0
        %1296 = vmatprep.subr.mxu0 0.0
        %1297 = vmatpush1.msra.mxu0 0.0
        %1298 = vmatprep.subr.mxu0 0.0
        %1299 = vmatpush1.msra.mxu0 0.0
        %1300 = vmatprep.subr.mxu0 0.0
        %1301 = vmatpush1.msra.mxu0 0.0
        %1302 = vmatprep.subr.mxu0 0.0
        %1303 = vmatpush1.msra.mxu0 0.0
        %1304 = vmatprep.subr.mxu0 0.0
        %1305 = vmatpush1.msra.mxu0 0.0
        %1306 = vmatprep.subr.mxu0 0.0
        %1307 = vmatpush1.msra.mxu0 0.0
        %1308 = vmatprep.subr.mxu0 0.0
        %1309 = vmatpush1.msra.mxu0 0.0
        %1310 = vmatprep.subr.mxu0 0.0
        %1311 = vmatpush1.msra.mxu0 0.0
        %1312 = vmatprep.subr.mxu0 0.0
        %1313 = vmatpush1.msra.mxu0 0.0
        %1314 = vmatprep.subr.mxu0 0.0
        %1315 = vmatpush1.msra.mxu0 0.0
        %1316 = vmatprep.subr.mxu0 0.0
        %1317 = vmatpush1.msra.mxu0 0.0
        %1318 = vmatprep.subr.mxu0 0.0
        %1319 = vmatpush1.msra.mxu0 0.0
        %1320 = vmatprep.subr.mxu0 0.0
        %1321 = vmatpush1.msra.mxu0 0.0
        %1322 = vmatprep.subr.mxu0 0.0
        %1323 = vmatpush1.msra.mxu0 0.0
        %1324 = vmatprep.subr.mxu0 0.0
        %1325 = vmatpush1.msra.mxu0 0.0
        %1326 = vmatprep.subr.mxu0 0.0
        %1327 = vmatpush1.msra.mxu0 0.0
        %1328 = vmatprep.subr.mxu0 0.0
        %1329 = vmatpush1.msra.mxu0 0.0
        %1330 = vmatprep.subr.mxu0 0.0
        %1331 = vmatpush1.msra.mxu0 0.0
        %1332 = vmatprep.subr.mxu0 0.0
        %1333 = vmatpush1.msra.mxu0 0.0
        %1334 = vmatprep.subr.mxu0 0.0
        %1335 = vmatpush1.msra.mxu0 0.0
        %1336 = vmatprep.subr.mxu0 0.0
        %1337 = vmatpush1.msra.mxu0 0.0
        %1338 = vmatprep.subr.mxu0 0.0
        %1339 = vmatpush1.msra.mxu0 0.0
        %1340 = vmatprep.subr.mxu0 0.0
        %1341 = vmatpush1.msra.mxu0 0.0
        %1342 = vmatprep.subr.mxu0 0.0
        %1343 = vmatpush1.msra.mxu0 0.0
        %1344 = vmatprep.subr.mxu0 0.0
        %1345 = vmatpush1.msra.mxu0 0.0
        %1346 = vmatprep.subr.mxu0 0.0
        %1347 = vmatpush1.msra.mxu0 0.0
        %1348 = vmatprep.subr.mxu0 0.0
        %1349 = vmatpush1.msra.mxu0 0.0
        %1350 = vmatprep.subr.mxu0 0.0
        %1351 = vmatpush1.msra.mxu0 0.0
        %1352 = vmatprep.subr.mxu0 0.0
        %1353 = vmatpush1.msra.mxu0 0.0
        %1354 = vmatprep.subr.mxu0 0.0
        %1355 = vmatpush1.msra.mxu0 0.0
        %1356 = vmatprep.mubr.f32.mxu0 0.0
        %1357 = vmatmul.mubr.f32.gmra.mrb[0].mxu0 %v1284
        %v1358 = vpop.f32.mrb[0].mxu0
        %v1359 = vadd.f32 0.0, %v1358
        %v1360 = vpop.f32.mrb[0].mxu0
        %v1361 = vadd.f32 0.0, %v1360
        %1362 = vdwg.mxu0
        %1363 = vmatprep.subr.mxu0 0.0
        %1364 = vmatpush1.msra.mxu0 %v1290
        %1365 = vmatprep.subr.mxu0 0.0
        %1366 = vmatpush1.msra.mxu0 0.0
        %1367 = vmatprep.subr.mxu0 0.0
        %1368 = vmatpush1.msra.mxu0 0.0
        %1369 = vmatprep.subr.mxu0 0.0
        %1370 = vmatpush1.msra.mxu0 0.0
        %1371 = vmatprep.subr.mxu0 0.0
        %1372 = vmatpush1.msra.mxu0 0.0
        %1373 = vmatprep.subr.mxu0 0.0
        %1374 = vmatpush1.msra.mxu0 0.0
        %1375 = vmatprep.subr.mxu0 0.0
        %1376 = vmatpush1.msra.mxu0 0.0
        %1377 = vmatprep.subr.mxu0 0.0
        %1378 = vmatpush1.msra.mxu0 0.0
        %1379 = vmatprep.subr.mxu0 0.0
        %1380 = vmatpush1.msra.mxu0 0.0
        %1381 = vmatprep.subr.mxu0 0.0
        %1382 = vmatpush1.msra.mxu0 0.0
        %1383 = vmatprep.subr.mxu0 0.0
        %1384 = vmatpush1.msra.mxu0 0.0
        %1385 = vmatprep.subr.mxu0 0.0
        %1386 = vmatpush1.msra.mxu0 0.0
        %1387 = vmatprep.subr.mxu0 0.0
        %1388 = vmatpush1.msra.mxu0 0.0
        %1389 = vmatprep.subr.mxu0 0.0
        %1390 = vmatpush1.msra.mxu0 0.0
        %1391 = vmatprep.subr.mxu0 0.0
        %1392 = vmatpush1.msra.mxu0 0.0
        %1393 = vmatprep.subr.mxu0 0.0
        %1394 = vmatpush1.msra.mxu0 0.0
        %1395 = vmatprep.subr.mxu0 0.0
        %1396 = vmatpush1.msra.mxu0 0.0
        %1397 = vmatprep.subr.mxu0 0.0
        %1398 = vmatpush1.msra.mxu0 0.0
        %1399 = vmatprep.subr.mxu0 0.0
        %1400 = vmatpush1.msra.mxu0 0.0
        %1401 = vmatprep.subr.mxu0 0.0
        %1402 = vmatpush1.msra.mxu0 0.0
        %1403 = vmatprep.subr.mxu0 0.0
        %1404 = vmatpush1.msra.mxu0 0.0
        %1405 = vmatprep.subr.mxu0 0.0
        %1406 = vmatpush1.msra.mxu0 0.0
        %1407 = vmatprep.subr.mxu0 0.0
        %1408 = vmatpush1.msra.mxu0 0.0
        %1409 = vmatprep.subr.mxu0 0.0
        %1410 = vmatpush1.msra.mxu0 0.0
        %1411 = vmatprep.subr.mxu0 0.0
        %1412 = vmatpush1.msra.mxu0 0.0
        %1413 = vmatprep.subr.mxu0 0.0
        %1414 = vmatpush1.msra.mxu0 0.0
        %1415 = vmatprep.subr.mxu0 0.0
        %1416 = vmatpush1.msra.mxu0 0.0
        %1417 = vmatprep.subr.mxu0 0.0
        %1418 = vmatpush1.msra.mxu0 0.0
        %1419 = vmatprep.subr.mxu0 0.0
        %1420 = vmatpush1.msra.mxu0 0.0
        %1421 = vmatprep.subr.mxu0 0.0
        %1422 = vmatpush1.msra.mxu0 0.0
        %1423 = vmatprep.subr.mxu0 0.0
        %1424 = vmatpush1.msra.mxu0 0.0
        %1425 = vmatprep.subr.mxu0 0.0
        %1426 = vmatpush1.msra.mxu0 0.0
        %1427 = vmatprep.mubr.f32.mxu0 0.0
        %1428 = vmatmul.mubr.f32.gmra.mrb[0].mxu0 %v1284
        %v1429 = vpop.f32.mrb[0].mxu0
        %v1430 = vadd.f32 0.0, %v1429
        %v1431 = vpop.f32.mrb[0].mxu0
        %1432 = vdwg.mxu0
        %v1433 = vadd.f32 %v1259, %v1359
        %v1434 = vadd.f32 %v1260, %v1361
        %v1435 = vadd.f32 %v1261, %v1430
        %s1436 = scalar_lea.vmem %s1, 28
        %v1437 = vld [vmem:[%s1436] sm:$0xf]
        %v1438 = vmul.f32 %v1437, %v260
        %v1439 = vld [vmem:[%s246] sm:$0xff]
        %v1440 = vld [vmem:[%s246 + $0x8] sm:$0xff]
        %v1443 = vcombine.high %v1439, %v1439
        %v1444 = vcombine.high %v1440, %v1440
        %1445 = vrot.lane.b32.xlu0 %v1439, 87
        %v1446 = vpop.permute.xlu0 %1445
        %1447 = vrot.lane.b32.xlu0 %v1443, 87
        %v1448 = vpop.permute.xlu0 %1447
        %1449 = vrot.lane.b32.xlu0 %v1440, 87
        %v1450 = vpop.permute.xlu0 %1449
        %1451 = vrot.lane.b32.xlu0 %v1444, 87
        %v1452 = vpop.permute.xlu0 %1451
        %vm1453 = vcmask 711680
        %v1454 = vsel %vm1453, %v1446, %v1448
        %v1455 = vsel %vm1453, %v1448, %v1450
        %v1456 = vsel %vm1453, %v1450, %v1452
        %v1458 = vsel %vm280, %v1438, 0
        %v1460 = vsel %vm284, %v1454, 0
        %v1462 = vsel %vm284, %v1455, 0
        %v1464 = vsel %vm284, %v1456, 0
        %1466 = vmatprep.subr.mxu0 %v1462
        %1467 = vmatpush1.msra.mxu0 %v1460
        %1468 = vmatprep.subr.mxu0 0.0
        %1469 = vmatpush1.msra.mxu0 0.0
        %1470 = vmatprep.subr.mxu0 0.0
        %1471 = vmatpush1.msra.mxu0 0.0
        %1472 = vmatprep.subr.mxu0 0.0
        %1473 = vmatpush1.msra.mxu0 0.0
        %1474 = vmatprep.subr.mxu0 0.0
        %1475 = vmatpush1.msra.mxu0 0.0
        %1476 = vmatprep.subr.mxu0 0.0
        %1477 = vmatpush1.msra.mxu0 0.0
        %1478 = vmatprep.subr.mxu0 0.0
        %1479 = vmatpush1.msra.mxu0 0.0
        %1480 = vmatprep.subr.mxu0 0.0
        %1481 = vmatpush1.msra.mxu0 0.0
        %1482 = vmatprep.subr.mxu0 0.0
        %1483 = vmatpush1.msra.mxu0 0.0
        %1484 = vmatprep.subr.mxu0 0.0
        %1485 = vmatpush1.msra.mxu0 0.0
        %1486 = vmatprep.subr.mxu0 0.0
        %1487 = vmatpush1.msra.mxu0 0.0
        %1488 = vmatprep.subr.mxu0 0.0
        %1489 = vmatpush1.msra.mxu0 0.0
        %1490 = vmatprep.subr.mxu0 0.0
        %1491 = vmatpush1.msra.mxu0 0.0
        %1492 = vmatprep.subr.mxu0 0.0
        %1493 = vmatpush1.msra.mxu0 0.0
        %1494 = vmatprep.subr.mxu0 0.0
        %1495 = vmatpush1.msra.mxu0 0.0
        %1496 = vmatprep.subr.mxu0 0.0
        %1497 = vmatpush1.msra.mxu0 0.0
        %1498 = vmatprep.subr.mxu0 0.0
        %1499 = vmatpush1.msra.mxu0 0.0
        %1500 = vmatprep.subr.mxu0 0.0
        %1501 = vmatpush1.msra.mxu0 0.0
        %1502 = vmatprep.subr.mxu0 0.0
        %1503 = vmatpush1.msra.mxu0 0.0
        %1504 = vmatprep.subr.mxu0 0.0
        %1505 = vmatpush1.msra.mxu0 0.0
        %1506 = vmatprep.subr.mxu0 0.0
        %1507 = vmatpush1.msra.mxu0 0.0
        %1508 = vmatprep.subr.mxu0 0.0
        %1509 = vmatpush1.msra.mxu0 0.0
        %1510 = vmatprep.subr.mxu0 0.0
        %1511 = vmatpush1.msra.mxu0 0.0
        %1512 = vmatprep.subr.mxu0 0.0
        %1513 = vmatpush1.msra.mxu0 0.0
        %1514 = vmatprep.subr.mxu0 0.0
        %1515 = vmatpush1.msra.mxu0 0.0
        %1516 = vmatprep.subr.mxu0 0.0
        %1517 = vmatpush1.msra.mxu0 0.0
        %1518 = vmatprep.subr.mxu0 0.0
        %1519 = vmatpush1.msra.mxu0 0.0
        %1520 = vmatprep.subr.mxu0 0.0
        %1521 = vmatpush1.msra.mxu0 0.0
        %1522 = vmatprep.subr.mxu0 0.0
        %1523 = vmatpush1.msra.mxu0 0.0
        %1524 = vmatprep.subr.mxu0 0.0
        %1525 = vmatpush1.msra.mxu0 0.0
        %1526 = vmatprep.subr.mxu0 0.0
        %1527 = vmatpush1.msra.mxu0 0.0
        %1528 = vmatprep.subr.mxu0 0.0
        %1529 = vmatpush1.msra.mxu0 0.0
        %1530 = vmatprep.mubr.f32.mxu0 0.0
        %1531 = vmatmul.mubr.f32.gmra.mrb[0].mxu0 %v1458
        %v1532 = vpop.f32.mrb[0].mxu0
        %v1533 = vadd.f32 0.0, %v1532
        %v1534 = vpop.f32.mrb[0].mxu0
        %v1535 = vadd.f32 0.0, %v1534
        %1536 = vdwg.mxu0
        %1537 = vmatprep.subr.mxu0 0.0
        %1538 = vmatpush1.msra.mxu0 %v1464
        %1539 = vmatprep.subr.mxu0 0.0
        %1540 = vmatpush1.msra.mxu0 0.0
        %1541 = vmatprep.subr.mxu0 0.0
        %1542 = vmatpush1.msra.mxu0 0.0
        %1543 = vmatprep.subr.mxu0 0.0
        %1544 = vmatpush1.msra.mxu0 0.0
        %1545 = vmatprep.subr.mxu0 0.0
        %1546 = vmatpush1.msra.mxu0 0.0
        %1547 = vmatprep.subr.mxu0 0.0
        %1548 = vmatpush1.msra.mxu0 0.0
        %1549 = vmatprep.subr.mxu0 0.0
        %1550 = vmatpush1.msra.mxu0 0.0
        %1551 = vmatprep.subr.mxu0 0.0
        %1552 = vmatpush1.msra.mxu0 0.0
        %1553 = vmatprep.subr.mxu0 0.0
        %1554 = vmatpush1.msra.mxu0 0.0
        %1555 = vmatprep.subr.mxu0 0.0
        %1556 = vmatpush1.msra.mxu0 0.0
        %1557 = vmatprep.subr.mxu0 0.0
        %1558 = vmatpush1.msra.mxu0 0.0
        %1559 = vmatprep.subr.mxu0 0.0
        %1560 = vmatpush1.msra.mxu0 0.0
        %1561 = vmatprep.subr.mxu0 0.0
        %1562 = vmatpush1.msra.mxu0 0.0
        %1563 = vmatprep.subr.mxu0 0.0
        %1564 = vmatpush1.msra.mxu0 0.0
        %1565 = vmatprep.subr.mxu0 0.0
        %1566 = vmatpush1.msra.mxu0 0.0
        %1567 = vmatprep.subr.mxu0 0.0
        %1568 = vmatpush1.msra.mxu0 0.0
        %1569 = vmatprep.subr.mxu0 0.0
        %1570 = vmatpush1.msra.mxu0 0.0
        %1571 = vmatprep.subr.mxu0 0.0
        %1572 = vmatpush1.msra.mxu0 0.0
        %1573 = vmatprep.subr.mxu0 0.0
        %1574 = vmatpush1.msra.mxu0 0.0
        %1575 = vmatprep.subr.mxu0 0.0
        %1576 = vmatpush1.msra.mxu0 0.0
        %1577 = vmatprep.subr.mxu0 0.0
        %1578 = vmatpush1.msra.mxu0 0.0
        %1579 = vmatprep.subr.mxu0 0.0
        %1580 = vmatpush1.msra.mxu0 0.0
        %1581 = vmatprep.subr.mxu0 0.0
        %1582 = vmatpush1.msra.mxu0 0.0
        %1583 = vmatprep.subr.mxu0 0.0
        %1584 = vmatpush1.msra.mxu0 0.0
        %1585 = vmatprep.subr.mxu0 0.0
        %1586 = vmatpush1.msra.mxu0 0.0
        %1587 = vmatprep.subr.mxu0 0.0
        %1588 = vmatpush1.msra.mxu0 0.0
        %1589 = vmatprep.subr.mxu0 0.0
        %1590 = vmatpush1.msra.mxu0 0.0
        %1591 = vmatprep.subr.mxu0 0.0
        %1592 = vmatpush1.msra.mxu0 0.0
        %1593 = vmatprep.subr.mxu0 0.0
        %1594 = vmatpush1.msra.mxu0 0.0
        %1595 = vmatprep.subr.mxu0 0.0
        %1596 = vmatpush1.msra.mxu0 0.0
        %1597 = vmatprep.subr.mxu0 0.0
        %1598 = vmatpush1.msra.mxu0 0.0
        %1599 = vmatprep.subr.mxu0 0.0
        %1600 = vmatpush1.msra.mxu0 0.0
        %1601 = vmatprep.mubr.f32.mxu0 0.0
        %1602 = vmatmul.mubr.f32.gmra.mrb[0].mxu0 %v1458
        %v1603 = vpop.f32.mrb[0].mxu0
        %v1604 = vadd.f32 0.0, %v1603
        %v1605 = vpop.f32.mrb[0].mxu0
        %1606 = vdwg.mxu0
        %v1607 = vadd.f32 %v1433, %v1533
        %v1608 = vadd.f32 %v1434, %v1535
        %v1609 = vadd.f32 %v1435, %v1604
        %s1610 = scalar_lea.vmem %s1, 32
        %v1611 = vld [vmem:[%s1610] sm:$0xf]
        %v1612 = vmul.f32 %v1611, %v260
        %v1613 = vld [vmem:[%s246] sm:$0xff]
        %v1614 = vld [vmem:[%s246 + $0x8] sm:$0xff]
        %v1617 = vcombine.high %v1613, %v1613
        %v1618 = vcombine.high %v1614, %v1614
        %1619 = vrot.lane.b32.xlu0 %v1613, 86
        %v1620 = vpop.permute.xlu0 %1619
        %1621 = vrot.lane.b32.xlu0 %v1617, 86
        %v1622 = vpop.permute.xlu0 %1621
        %1623 = vrot.lane.b32.xlu0 %v1614, 86
        %v1624 = vpop.permute.xlu0 %1623
        %1625 = vrot.lane.b32.xlu0 %v1618, 86
        %v1626 = vpop.permute.xlu0 %1625
        %vm1627 = vcmask 703488
        %v1628 = vsel %vm1627, %v1620, %v1622
        %v1629 = vsel %vm1627, %v1622, %v1624
        %v1630 = vsel %vm1627, %v1624, %v1626
        %v1632 = vsel %vm280, %v1612, 0
        %v1634 = vsel %vm284, %v1628, 0
        %v1636 = vsel %vm284, %v1629, 0
        %v1638 = vsel %vm284, %v1630, 0
        %1640 = vmatprep.subr.mxu0 %v1636
        %1641 = vmatpush1.msra.mxu0 %v1634
        %1642 = vmatprep.subr.mxu0 0.0
        %1643 = vmatpush1.msra.mxu0 0.0
        %1644 = vmatprep.subr.mxu0 0.0
        %1645 = vmatpush1.msra.mxu0 0.0
        %1646 = vmatprep.subr.mxu0 0.0
        %1647 = vmatpush1.msra.mxu0 0.0
        %1648 = vmatprep.subr.mxu0 0.0
        %1649 = vmatpush1.msra.mxu0 0.0
        %1650 = vmatprep.subr.mxu0 0.0
        %1651 = vmatpush1.msra.mxu0 0.0
        %1652 = vmatprep.subr.mxu0 0.0
        %1653 = vmatpush1.msra.mxu0 0.0
        %1654 = vmatprep.subr.mxu0 0.0
        %1655 = vmatpush1.msra.mxu0 0.0
        %1656 = vmatprep.subr.mxu0 0.0
        %1657 = vmatpush1.msra.mxu0 0.0
        %1658 = vmatprep.subr.mxu0 0.0
        %1659 = vmatpush1.msra.mxu0 0.0
        %1660 = vmatprep.subr.mxu0 0.0
        %1661 = vmatpush1.msra.mxu0 0.0
        %1662 = vmatprep.subr.mxu0 0.0
        %1663 = vmatpush1.msra.mxu0 0.0
        %1664 = vmatprep.subr.mxu0 0.0
        %1665 = vmatpush1.msra.mxu0 0.0
        %1666 = vmatprep.subr.mxu0 0.0
        %1667 = vmatpush1.msra.mxu0 0.0
        %1668 = vmatprep.subr.mxu0 0.0
        %1669 = vmatpush1.msra.mxu0 0.0
        %1670 = vmatprep.subr.mxu0 0.0
        %1671 = vmatpush1.msra.mxu0 0.0
        %1672 = vmatprep.subr.mxu0 0.0
        %1673 = vmatpush1.msra.mxu0 0.0
        %1674 = vmatprep.subr.mxu0 0.0
        %1675 = vmatpush1.msra.mxu0 0.0
        %1676 = vmatprep.subr.mxu0 0.0
        %1677 = vmatpush1.msra.mxu0 0.0
        %1678 = vmatprep.subr.mxu0 0.0
        %1679 = vmatpush1.msra.mxu0 0.0
        %1680 = vmatprep.subr.mxu0 0.0
        %1681 = vmatpush1.msra.mxu0 0.0
        %1682 = vmatprep.subr.mxu0 0.0
        %1683 = vmatpush1.msra.mxu0 0.0
        %1684 = vmatprep.subr.mxu0 0.0
        %1685 = vmatpush1.msra.mxu0 0.0
        %1686 = vmatprep.subr.mxu0 0.0
        %1687 = vmatpush1.msra.mxu0 0.0
        %1688 = vmatprep.subr.mxu0 0.0
        %1689 = vmatpush1.msra.mxu0 0.0
        %1690 = vmatprep.subr.mxu0 0.0
        %1691 = vmatpush1.msra.mxu0 0.0
        %1692 = vmatprep.subr.mxu0 0.0
        %1693 = vmatpush1.msra.mxu0 0.0
        %1694 = vmatprep.subr.mxu0 0.0
        %1695 = vmatpush1.msra.mxu0 0.0
        %1696 = vmatprep.subr.mxu0 0.0
        %1697 = vmatpush1.msra.mxu0 0.0
        %1698 = vmatprep.subr.mxu0 0.0
        %1699 = vmatpush1.msra.mxu0 0.0
        %1700 = vmatprep.subr.mxu0 0.0
        %1701 = vmatpush1.msra.mxu0 0.0
        %1702 = vmatprep.subr.mxu0 0.0
        %1703 = vmatpush1.msra.mxu0 0.0
        %1704 = vmatprep.mubr.f32.mxu0 0.0
        %1705 = vmatmul.mubr.f32.gmra.mrb[0].mxu0 %v1632
        %v1706 = vpop.f32.mrb[0].mxu0
        %v1707 = vadd.f32 0.0, %v1706
        %v1708 = vpop.f32.mrb[0].mxu0
        %v1709 = vadd.f32 0.0, %v1708
        %1710 = vdwg.mxu0
        %1711 = vmatprep.subr.mxu0 0.0
        %1712 = vmatpush1.msra.mxu0 %v1638
        %1713 = vmatprep.subr.mxu0 0.0
        %1714 = vmatpush1.msra.mxu0 0.0
        %1715 = vmatprep.subr.mxu0 0.0
        %1716 = vmatpush1.msra.mxu0 0.0
        %1717 = vmatprep.subr.mxu0 0.0
        %1718 = vmatpush1.msra.mxu0 0.0
        %1719 = vmatprep.subr.mxu0 0.0
        %1720 = vmatpush1.msra.mxu0 0.0
        %1721 = vmatprep.subr.mxu0 0.0
        %1722 = vmatpush1.msra.mxu0 0.0
        %1723 = vmatprep.subr.mxu0 0.0
        %1724 = vmatpush1.msra.mxu0 0.0
        %1725 = vmatprep.subr.mxu0 0.0
        %1726 = vmatpush1.msra.mxu0 0.0
        %1727 = vmatprep.subr.mxu0 0.0
        %1728 = vmatpush1.msra.mxu0 0.0
        %1729 = vmatprep.subr.mxu0 0.0
        %1730 = vmatpush1.msra.mxu0 0.0
        %1731 = vmatprep.subr.mxu0 0.0
        %1732 = vmatpush1.msra.mxu0 0.0
        %1733 = vmatprep.subr.mxu0 0.0
        %1734 = vmatpush1.msra.mxu0 0.0
        %1735 = vmatprep.subr.mxu0 0.0
        %1736 = vmatpush1.msra.mxu0 0.0
        %1737 = vmatprep.subr.mxu0 0.0
        %1738 = vmatpush1.msra.mxu0 0.0
        %1739 = vmatprep.subr.mxu0 0.0
        %1740 = vmatpush1.msra.mxu0 0.0
        %1741 = vmatprep.subr.mxu0 0.0
        %1742 = vmatpush1.msra.mxu0 0.0
        %1743 = vmatprep.subr.mxu0 0.0
        %1744 = vmatpush1.msra.mxu0 0.0
        %1745 = vmatprep.subr.mxu0 0.0
        %1746 = vmatpush1.msra.mxu0 0.0
        %1747 = vmatprep.subr.mxu0 0.0
        %1748 = vmatpush1.msra.mxu0 0.0
        %1749 = vmatprep.subr.mxu0 0.0
        %1750 = vmatpush1.msra.mxu0 0.0
        %1751 = vmatprep.subr.mxu0 0.0
        %1752 = vmatpush1.msra.mxu0 0.0
        %1753 = vmatprep.subr.mxu0 0.0
        %1754 = vmatpush1.msra.mxu0 0.0
        %1755 = vmatprep.subr.mxu0 0.0
        %1756 = vmatpush1.msra.mxu0 0.0
        %1757 = vmatprep.subr.mxu0 0.0
        %1758 = vmatpush1.msra.mxu0 0.0
        %1759 = vmatprep.subr.mxu0 0.0
        %1760 = vmatpush1.msra.mxu0 0.0
        %1761 = vmatprep.subr.mxu0 0.0
        %1762 = vmatpush1.msra.mxu0 0.0
        %1763 = vmatprep.subr.mxu0 0.0
        %1764 = vmatpush1.msra.mxu0 0.0
        %1765 = vmatprep.subr.mxu0 0.0
        %1766 = vmatpush1.msra.mxu0 0.0
        %1767 = vmatprep.subr.mxu0 0.0
        %1768 = vmatpush1.msra.mxu0 0.0
        %1769 = vmatprep.subr.mxu0 0.0
        %1770 = vmatpush1.msra.mxu0 0.0
        %1771 = vmatprep.subr.mxu0 0.0
        %1772 = vmatpush1.msra.mxu0 0.0
        %1773 = vmatprep.subr.mxu0 0.0
        %1774 = vmatpush1.msra.mxu0 0.0
        %1775 = vmatprep.mubr.f32.mxu0 0.0
        %1776 = vmatmul.mubr.f32.gmra.mrb[0].mxu0 %v1632
        %v1777 = vpop.f32.mrb[0].mxu0
        %v1778 = vadd.f32 0.0, %v1777
        %v1779 = vpop.f32.mrb[0].mxu0
        %1780 = vdwg.mxu0
        %v1781 = vadd.f32 %v1607, %v1707
        %v1782 = vadd.f32 %v1608, %v1709
        %v1783 = vadd.f32 %v1609, %v1778
        %v1784 = vld [vmem:[%s253] sm:$0xf]
        %1786 = vset.pattern.permute.xlu0 0
        %1787 = vperm.xlu0 %1786, %v1784
        %v1788 = vpop.permute.xlu0 %1787
        %v1790 = vmul.f32 %v1781, %v1788
        %v1791 = vmul.f32 %v1782, %v1788
        %v1792 = vmul.f32 %v1783, %v1788
        %v1793 = vld [vmem:[%s4] sm:$0xf]
        %1795 = vset.pattern.permute.xlu0 0
        %1796 = vperm.xlu0 %1795, %v1793
        %v1797 = vpop.permute.xlu0 %1796
        %v1799 = vadd.f32 %v1790, %v1797
        %v1800 = vadd.f32 %v1791, %v1797
        %v1801 = vadd.f32 %v1792, %v1797
        %v1804 = vcombine.low %v1799, %v1800
        %1806 = vst [vmem:[%s241] sm:$0xff] %v1804
        %vm1807 = vcmask 846848
        %1808 = vst.msk [vmem:[%s241 + $0x8] sm:$0xf] %vm1807, %v1801
        %s1809 = sand.u32 %s147, 1
        %s1810 = scalar_lea.sflag [#allocation3], %s1809
        %s1811 = sand.u32 %s147, 1
        %s1812 = smul.addr %s1811, 12
        %s1813 = scalar_lea.vmem [#allocation2], %s1812
        // Predicated region
        $region41: #{tpu_custom_call.1} parent=39 // pred_check
          %p1814 = pneg %p157
        $region42: #{tpu_custom_call.1} parent=39 // pred_check_branch
          %1816 = sbr.rel (%p1814) target = $region44
        $region43: #{tpu_custom_call.1} parent=39 // pred_region
          %s1818 = ssub.s32 192, 192
          %1819 = vsyncadd %s1810, %s1818
          %s1820 = smul.addr %s19, 3
          %s1821 = smul.addr %s1820, 64
          %s1822 = scalar_lea.hbm %s5, %s1821
          %s1824 = sshll.u32 %s1813, 4
          %s1825 = int_to_ptr.vmem [resolvable:$true] %s1824
          %1827 = dma.vmem_to_hbm [thread:$0]  %s1825, 192, %s1822, %s1810
        $region44: #{tpu_custom_call.1} parent=39 // pred_fallthru
          _
      $region40: #{tpu_custom_call.1} parent=5 // pred_fallthru
        _
      %p1828 = scmp.le.s32.totalorder 2, %s14
      // Predicated region
      $region45: #{tpu_custom_call.1} parent=5 // pred_check
        %p1829 = pneg %p1828
      $region46: #{tpu_custom_call.1} parent=5 // pred_check_branch
        %1831 = sbr.rel (%p1829) target = $region48
      $region47: #{tpu_custom_call.1} parent=5 // pred_region
        %s1832 = ssub.s32 %s14, 2
        // Predicated region
        $region49: #{tpu_custom_call.1} parent=47 // pred_check
          %p1833 = pneg %p163
        $region50: #{tpu_custom_call.1} parent=47 // pred_check_branch
          %1835 = sbr.rel (%p1833) target = $region52
        $region51: #{tpu_custom_call.1} parent=47 // pred_region
          %s1836 = sand.u32 %s148, 1
          %s1837 = scalar_lea.sflag [#allocation3], %s1836
          %s1838 = sand.u32 %s148, 1
          %s1839 = smul.addr %s1838, 12
          %s1840 = scalar_lea.vmem [#allocation2], %s1839
          %1841 = dma.done %s1837, 192
        $region52: #{tpu_custom_call.1} parent=47 // pred_fallthru
          _
      $region48: #{tpu_custom_call.1} parent=5 // pred_fallthru
        _
    $region6: #{tpu_custom_call.1} parent=1 // loop_footer
      %s18 = sadd.s32 1, %s14
    $region7: #{tpu_custom_call.1} parent=1 // loop_footer_branch
      %13 = sbr.rel target = $region3
    $region8: #{tpu_custom_call.1} parent=1 // loop_exit
      _
    %1842 = vsyncpa [#allocation3], 1
    %s1843 = scalar_lea.sflag [#allocation3], 1
    %1844 = vsyncpa %s1843, 1

</llo_original>
